<compile_context>
chip_gen: v7x
topology: tpu7x:2x2x1
jax: 0.10.0
libtpu: 0.0.40
codegen_flags: <defaults>
</compile_context>

<pallas_src>
import jax
import jax.numpy as jnp
from jax.experimental import pallas as pl
from jax.experimental.pallas import tpu as pltpu


# ----------------------------- hyperparameters -----------------------------
N_LATENT = 16        # n_latent (D); condition dim == n_latent (condition_new is (1, n_latent))
N_COND   = N_LATENT  # condition dimension
N_FLOWS  = 4         # number of coupling blocks
HIDDEN   = 32        # coupling-net hidden width
BATCH    = 16


# ------------------------------- Pallas kernel ------------------------------
def _flow_trans_kernel(z_ref, cond_ref, w1b_plus_ref, w1a_pack_ref, wst_ref, slab_ref,
                       out_ref):
    """Forward conditional flow (with `cond`) then inverse flow (with `cond_new`).

    Shapes seen by the kernel (single block, no grid):
      z / out   : (B, D)
      cond      : (B, Dc)
      w1b_plus  : (Dc + 2, K*H)   rows 0..Dc-1 = condition projection weights (all K blocks),
                                  row Dc = folded forward bias (b1 + ActNorm shift),
                                  row Dc+1 = precomputed cond_new projection (reverse path)
      w1a_pack  : (2K, Dh, H)     [0:K] forward (ActNorm-folded), [K:2K] reverse (raw)
      wst       : (K, H, D)       fused s|t second-layer weights
      slab      : (K, 8, Dh)      rows: loc1, loc2, scale1, scale2, inv_scale1, inv_scale2, bs, bt
    """
    Dc = cond_ref.shape[1]
    K = wst_ref.shape[0]
    H = wst_ref.shape[1]
    D = z_ref.shape[1]
    Dh = D // 2

    z = z_ref[...]                      # (B, D)
    z1 = z[:, :Dh]                      # (B, Dh)
    z2 = z[:, Dh:]                      # (B, Dh)
    c = cond_ref[...]                   # (B, Dc)

    w1b_plus = w1b_plus_ref[...]        # (Dc+2, K*H)
    w1b_all = w1b_plus[:Dc]             # (Dc, K*H)
    b_fwd = w1b_plus[Dc:Dc + 1]         # (1, K*H)  folded forward first-layer bias
    cnew_p = w1b_plus[Dc + 1:Dc + 2]    # (1, K*H)  precomputed cond_new projection (+ b1)

    # One lane-dense condition projection for ALL K forward blocks, bias folded in once.
    cond_p = jnp.dot(c, w1b_all, preferred_element_type=jnp.float32) + b_fwd   # (B, K*H)

    def st_from(h_pre, wst_k, bs, bt):
        h = jnp.tanh(h_pre)
        st = jnp.dot(h, wst_k, preferred_element_type=jnp.float32)   # (B, D) = [s | t]
        s = jnp.tanh(st[:, :Dh] + bs)
        t = st[:, Dh:] + bt
        return s, t

    # ---------------- forward flow: zz = flow(latent, condition) ----------------
    for k in range(K):
        p = slab_ref[k]                                   # (8, Dh)
        loc1, loc2 = p[0:1], p[1:2]
        sc1, sc2 = p[2:3], p[3:4]
        bs, bt = p[6:7], p[7:8]
        # ActNorm is folded into w1a_pack[k]; the MXU push starts from raw z1 while the
        # VPU computes the carried normalized halves.
        h_pre = (jnp.dot(z1, w1a_pack_ref[k], preferred_element_type=jnp.float32)
                 + cond_p[:, k * H:(k + 1) * H])
        z1n = (z1 - loc1) * sc1
        z2n = (z2 - loc2) * sc2
        s, t = st_from(h_pre, wst_ref[k], bs, bt)
        z2t = z2n * jnp.exp(s) + t
        # half-swap permutation
        z1, z2 = z2t, z1n

    # -------------- inverse flow: zprime = flow.reverse(zz, cond_new) -----------
    for k in reversed(range(K)):
        p = slab_ref[k]
        loc1, loc2 = p[0:1], p[1:2]
        isc1, isc2 = p[4:5], p[5:6]
        bs, bt = p[6:7], p[7:8]
        # inverse half-swap
        z1, z2 = z2, z1
        # reverse coupling sees the normalized z1 -> raw (unfolded) first-layer weights,
        # condition term fully precomputed (no in-kernel matmul for cond_new).
        h_pre = (jnp.dot(z1, w1a_pack_ref[K + k], preferred_element_type=jnp.float32)
                 + cnew_p[:, k * H:(k + 1) * H])
        s, t = st_from(h_pre, wst_ref[k], bs, bt)
        z2 = (z2 - t) * jnp.exp(-s)        # exact exp(-s): keeps forward+reverse exact inverse
        # inverse ActNorm
        z1 = z1 * isc1 + loc1
        z2 = z2 * isc2 + loc2

    out_ref[...] = jnp.concatenate([z1, z2], axis=-1)     # single lane-dense (B, D) store


# ------------------------------- parameter init -----------------------------
def init_params(key, n_latent=N_LATENT, n_cond=N_COND, n_flows=N_FLOWS, hidden=HIDDEN):
    Dh = n_latent // 2
    ks = jax.random.split(key, 8)
    scale = 0.2
    return {
        # nn.Parameter sampled from Normal(0, 1) in __init__
        "condition_new": jax.random.normal(ks[0], (1, n_cond), jnp.float32),
        "loc":  0.1 * jax.random.normal(ks[1], (n_flows, 1, n_latent), jnp.float32),
        "logs": 0.1 * jax.random.normal(ks[2], (n_flows, 1, n_latent), jnp.float32),
        "w1a":  scale * jax.random.normal(ks[3], (n_flows, Dh, hidden), jnp.float32),
        "w1b":  scale * jax.random.normal(ks[4], (n_flows, n_cond, hidden), jnp.float32),
        "b1":   jnp.zeros((n_flows, 1, hidden), jnp.float32),
        "ws":   scale * jax.random.normal(ks[5], (n_flows, hidden, Dh), jnp.float32),
        "bs":   jnp.zeros((n_flows, 1, Dh), jnp.float32),
        "wt":   scale * jax.random.normal(ks[6], (n_flows, hidden, Dh), jnp.float32),
        "bt":   jnp.zeros((n_flows, 1, Dh), jnp.float32),
    }


def pack_params(params):
    """One-time parameter packing: everything batch-independent happens here, not per call."""
    w1a, w1b, b1 = params["w1a"], params["w1b"], params["b1"]
    ws, wt, bs, bt = params["ws"], params["wt"], params["bs"], params["bt"]
    loc, logs = params["loc"], params["logs"]
    cond_new = params["condition_new"].astype(jnp.float32)
    K, Dh, H = w1a.shape
    Dc = w1b.shape[1]

    scale = jnp.exp(logs)                  # pre-baked: no in-kernel exp of parameters
    inv_scale = jnp.exp(-logs)
    loc1, loc2 = loc[:, :, :Dh], loc[:, :, Dh:]
    sc1, sc2 = scale[:, :, :Dh], scale[:, :, Dh:]
    isc1, isc2 = inv_scale[:, :, :Dh], inv_scale[:, :, Dh:]

    # (K, Dc, H) -> (Dc, K*H): one lane-dense condition matmul for all K blocks
    w1b_all = jnp.transpose(w1b, (1, 0, 2)).reshape(Dc, K * H)
    b1_all = b1.reshape(1, K * H)

    # Fold forward ActNorm (z1 half) into the first coupling layer.
    w1a_fwd = jnp.swapaxes(sc1, 1, 2) * w1a                    # (K, Dh, H)
    shift = -jnp.matmul(loc1 * sc1, w1a)                       # (K, 1, H)
    b_fwd_all = (b1 + shift).reshape(1, K * H)

    # Batch-independent reverse condition projection, fully precomputed.
    cnew_proj = cond_new @ w1b_all + b1_all                    # (1, K*H)

    return {
        "w1b_plus": jnp.concatenate([w1b_all, b_fwd_all, cnew_proj], axis=0),   # (Dc+2, K*H)
        "w1a_pack": jnp.concatenate([w1a_fwd, w1a], axis=0),                    # (2K, Dh, H)
        "wst": jnp.concatenate([ws, wt], axis=-1),                              # (K, H, 2*Dh)
        "slab": jnp.concatenate([loc1, loc2, sc1, sc2, isc1, isc2, bs, bt], axis=1),  # (K, 8, Dh)
    }


# ------------------------------- JAX wrapper --------------------------------
@jax.jit
def scvi_optim_trans_forward(packed, latent_start, condition):
    """Equivalent of SCVI_OptimTrans.forward(latent_start, condition), using packed params."""
    latent_start = latent_start.astype(jnp.float32)
    condition = condition.astype(jnp.float32)
    B, D = latent_start.shape

    vmem = pl.BlockSpec(memory_space=pltpu.MemorySpace.VMEM)
    return pl.pallas_call(
        _flow_trans_kernel,
        out_shape=jax.ShapeDtypeStruct((B, D), jnp.float32),
        in_specs=[vmem] * 6,
        out_specs=vmem,
    )(latent_start, condition,
      packed["w1b_plus"], packed["w1a_pack"], packed["wst"], packed["slab"])


# ---------------------------------- main -------------------------------------
if __name__ == "__main__":
    import numpy as np

    key = jax.random.PRNGKey(0)
    kp, kl, kc = jax.random.split(key, 3)

    params = init_params(kp)
    packed = pack_params(params)
    latent_start = jax.random.normal(kl, (BATCH, N_LATENT), jnp.float32)
    condition = jax.random.normal(kc, (BATCH, N_COND), jnp.float32)

    zprime = jax.block_until_ready(scvi_optim_trans_forward(packed, latent_start, condition))
    assert zprime.shape == (BATCH, N_LATENT) and zprime.dtype == jnp.float32

    # Invertibility sanity check: reversing with the SAME condition must recover the input.
    # Use a batch of identical conditions so tile(condition_new, (B, 1)) == condition.
    cond0 = condition[0:1]
    params_same = dict(params)
    params_same["condition_new"] = cond0
    packed_same = pack_params(params_same)
    cond_rep = jnp.tile(cond0, (BATCH, 1))
    recon = jax.block_until_ready(
        scvi_optim_trans_forward(packed_same, latent_start, cond_rep)
    )
    # (1e-3 tolerance: forward uses ActNorm-folded weights, reverse uses the raw ones, so the
    #  two directions differ by a few f32 ulps per block even though the fold is exact math.)
    assert np.allclose(np.asarray(recon), np.asarray(latent_start), atol=1e-3), \
        "flow forward+reverse with identical condition should be identity"

    print("KERNEL_OK")
</pallas_src>

<mosaic_0001>
module attributes {stable_mosaic.version = 11 : i64} {
  func.func @_flow_trans_kernel(%arg0: memref<16x16xf32, #tpu.memory_space<vmem>>, %arg1: memref<16x16xf32, #tpu.memory_space<vmem>>, %arg2: memref<18x128xf32, #tpu.memory_space<vmem>>, %arg3: memref<8x8x32xf32, #tpu.memory_space<vmem>>, %arg4: memref<4x32x16xf32, #tpu.memory_space<vmem>>, %arg5: memref<4x8x8xf32, #tpu.memory_space<vmem>>, %arg6: memref<16x16xf32, #tpu.memory_space<vmem>>) attributes {dimension_semantics = [], scalar_prefetch = 0 : i64, scratch_operands = 0 : i64, tpu.core_type = #tpu.core_type<tc>} {
    %c0 = arith.constant 0 : index
    %c0_0 = arith.constant 0 : index
    %0 = vector.load %arg0[%c0, %c0_0] : memref<16x16xf32, #tpu.memory_space<vmem>>, vector<16x16xf32>
    %1 = vector.extract_strided_slice %0 {offsets = [0, 0], sizes = [16, 8], strides = [1, 1]} : vector<16x16xf32> to vector<16x8xf32>
    %2 = vector.extract_strided_slice %0 {offsets = [0, 8], sizes = [16, 8], strides = [1, 1]} : vector<16x16xf32> to vector<16x8xf32>
    %c0_1 = arith.constant 0 : index
    %c0_2 = arith.constant 0 : index
    %3 = vector.load %arg1[%c0_1, %c0_2] : memref<16x16xf32, #tpu.memory_space<vmem>>, vector<16x16xf32>
    %c0_3 = arith.constant 0 : index
    %c0_4 = arith.constant 0 : index
    %4 = vector.load %arg2[%c0_3, %c0_4] : memref<18x128xf32, #tpu.memory_space<vmem>>, vector<18x128xf32>
    %5 = vector.extract_strided_slice %4 {offsets = [0, 0], sizes = [16, 128], strides = [1, 1]} : vector<18x128xf32> to vector<16x128xf32>
    %6 = vector.extract_strided_slice %4 {offsets = [16, 0], sizes = [1, 128], strides = [1, 1]} : vector<18x128xf32> to vector<1x128xf32>
    %7 = vector.extract_strided_slice %4 {offsets = [17, 0], sizes = [1, 128], strides = [1, 1]} : vector<18x128xf32> to vector<1x128xf32>
    %cst = arith.constant dense<0.000000e+00> : vector<16x128xf32>
    %8 = tpu.matmul %3, %5, %cst {dimension_numbers = #tpu.dot_dimension_numbers<[1], [0], [0], [1], [0, 0, 1, 1], [], []>} : vector<16x16xf32>, vector<16x128xf32>, vector<16x128xf32> -> vector<16x128xf32>
    %9 = vector.broadcast %6 : vector<1x128xf32> to vector<16x128xf32>
    %10 = arith.addf %8, %9 : vector<16x128xf32>
    %c0_5 = arith.constant 0 : index
    %c0_6 = arith.constant 0 : index
    %c0_7 = arith.constant 0 : index
    %11 = vector.load %arg5[%c0_5, %c0_6, %c0_7] : memref<4x8x8xf32, #tpu.memory_space<vmem>>, vector<1x8x8xf32>
    %12 = vector.shape_cast %11 : vector<1x8x8xf32> to vector<8x8xf32>
    %13 = vector.extract_strided_slice %12 {offsets = [0, 0], sizes = [1, 8], strides = [1, 1]} : vector<8x8xf32> to vector<1x8xf32>
    %14 = vector.extract_strided_slice %12 {offsets = [1, 0], sizes = [1, 8], strides = [1, 1]} : vector<8x8xf32> to vector<1x8xf32>
    %15 = vector.extract_strided_slice %12 {offsets = [2, 0], sizes = [1, 8], strides = [1, 1]} : vector<8x8xf32> to vector<1x8xf32>
    %16 = vector.extract_strided_slice %12 {offsets = [3, 0], sizes = [1, 8], strides = [1, 1]} : vector<8x8xf32> to vector<1x8xf32>
    %17 = vector.extract_strided_slice %12 {offsets = [6, 0], sizes = [1, 8], strides = [1, 1]} : vector<8x8xf32> to vector<1x8xf32>
    %18 = vector.extract_strided_slice %12 {offsets = [7, 0], sizes = [1, 8], strides = [1, 1]} : vector<8x8xf32> to vector<1x8xf32>
    %c0_8 = arith.constant 0 : index
    %c0_9 = arith.constant 0 : index
    %c0_10 = arith.constant 0 : index
    %19 = vector.load %arg3[%c0_8, %c0_9, %c0_10] : memref<8x8x32xf32, #tpu.memory_space<vmem>>, vector<1x8x32xf32>
    %20 = vector.shape_cast %19 : vector<1x8x32xf32> to vector<8x32xf32>
    %cst_11 = arith.constant dense<0.000000e+00> : vector<16x32xf32>
    %21 = tpu.matmul %1, %20, %cst_11 {dimension_numbers = #tpu.dot_dimension_numbers<[1], [0], [0], [1], [0, 0, 1, 1], [], []>} : vector<16x8xf32>, vector<8x32xf32>, vector<16x32xf32> -> vector<16x32xf32>
    %22 = vector.extract_strided_slice %10 {offsets = [0, 0], sizes = [16, 32], strides = [1, 1]} : vector<16x128xf32> to vector<16x32xf32>
    %23 = arith.addf %21, %22 : vector<16x32xf32>
    %24 = vector.broadcast %13 : vector<1x8xf32> to vector<16x8xf32>
    %25 = arith.subf %1, %24 : vector<16x8xf32>
    %26 = vector.broadcast %15 : vector<1x8xf32> to vector<16x8xf32>
    %27 = arith.mulf %25, %26 : vector<16x8xf32>
    %28 = vector.broadcast %14 : vector<1x8xf32> to vector<16x8xf32>
    %29 = arith.subf %2, %28 : vector<16x8xf32>
    %30 = vector.broadcast %16 : vector<1x8xf32> to vector<16x8xf32>
    %31 = arith.mulf %29, %30 : vector<16x8xf32>
    %c0_12 = arith.constant 0 : index
    %c0_13 = arith.constant 0 : index
    %c0_14 = arith.constant 0 : index
    %32 = vector.load %arg4[%c0_12, %c0_13, %c0_14] : memref<4x32x16xf32, #tpu.memory_space<vmem>>, vector<1x32x16xf32>
    %33 = vector.shape_cast %32 : vector<1x32x16xf32> to vector<32x16xf32>
    %34 = math.tanh %23 : vector<16x32xf32>
    %cst_15 = arith.constant dense<0.000000e+00> : vector<16x16xf32>
    %35 = tpu.matmul %34, %33, %cst_15 {dimension_numbers = #tpu.dot_dimension_numbers<[1], [0], [0], [1], [0, 0, 1, 1], [], []>} : vector<16x32xf32>, vector<32x16xf32>, vector<16x16xf32> -> vector<16x16xf32>
    %36 = vector.extract_strided_slice %35 {offsets = [0, 0], sizes = [16, 8], strides = [1, 1]} : vector<16x16xf32> to vector<16x8xf32>
    %37 = vector.broadcast %17 : vector<1x8xf32> to vector<16x8xf32>
    %38 = arith.addf %36, %37 : vector<16x8xf32>
    %39 = math.tanh %38 : vector<16x8xf32>
    %40 = vector.extract_strided_slice %35 {offsets = [0, 8], sizes = [16, 8], strides = [1, 1]} : vector<16x16xf32> to vector<16x8xf32>
    %41 = vector.broadcast %18 : vector<1x8xf32> to vector<16x8xf32>
    %42 = arith.addf %40, %41 : vector<16x8xf32>
    %43 = math.exp %39 : vector<16x8xf32>
    %44 = arith.mulf %31, %43 : vector<16x8xf32>
    %45 = arith.addf %44, %42 : vector<16x8xf32>
    %c1 = arith.constant 1 : index
    %c0_16 = arith.constant 0 : index
    %c0_17 = arith.constant 0 : index
    %46 = vector.load %arg5[%c1, %c0_16, %c0_17] : memref<4x8x8xf32, #tpu.memory_space<vmem>>, vector<1x8x8xf32>
    %47 = vector.shape_cast %46 : vector<1x8x8xf32> to vector<8x8xf32>
    %48 = vector.extract_strided_slice %47 {offsets = [0, 0], sizes = [1, 8], strides = [1, 1]} : vector<8x8xf32> to vector<1x8xf32>
    %49 = vector.extract_strided_slice %47 {offsets = [1, 0], sizes = [1, 8], strides = [1, 1]} : vector<8x8xf32> to vector<1x8xf32>
    %50 = vector.extract_strided_slice %47 {offsets = [2, 0], sizes = [1, 8], strides = [1, 1]} : vector<8x8xf32> to vector<1x8xf32>
    %51 = vector.extract_strided_slice %47 {offsets = [3, 0], sizes = [1, 8], strides = [1, 1]} : vector<8x8xf32> to vector<1x8xf32>
    %52 = vector.extract_strided_slice %47 {offsets = [6, 0], sizes = [1, 8], strides = [1, 1]} : vector<8x8xf32> to vector<1x8xf32>
    %53 = vector.extract_strided_slice %47 {offsets = [7, 0], sizes = [1, 8], strides = [1, 1]} : vector<8x8xf32> to vector<1x8xf32>
    %c1_18 = arith.constant 1 : index
    %c0_19 = arith.constant 0 : index
    %c0_20 = arith.constant 0 : index
    %54 = vector.load %arg3[%c1_18, %c0_19, %c0_20] : memref<8x8x32xf32, #tpu.memory_space<vmem>>, vector<1x8x32xf32>
    %55 = vector.shape_cast %54 : vector<1x8x32xf32> to vector<8x32xf32>
    %cst_21 = arith.constant dense<0.000000e+00> : vector<16x32xf32>
    %56 = tpu.matmul %45, %55, %cst_21 {dimension_numbers = #tpu.dot_dimension_numbers<[1], [0], [0], [1], [0, 0, 1, 1], [], []>} : vector<16x8xf32>, vector<8x32xf32>, vector<16x32xf32> -> vector<16x32xf32>
    %57 = vector.extract_strided_slice %10 {offsets = [0, 32], sizes = [16, 32], strides = [1, 1]} : vector<16x128xf32> to vector<16x32xf32>
    %58 = arith.addf %56, %57 : vector<16x32xf32>
    %59 = vector.broadcast %48 : vector<1x8xf32> to vector<16x8xf32>
    %60 = arith.subf %45, %59 : vector<16x8xf32>
    %61 = vector.broadcast %50 : vector<1x8xf32> to vector<16x8xf32>
    %62 = arith.mulf %60, %61 : vector<16x8xf32>
    %63 = vector.broadcast %49 : vector<1x8xf32> to vector<16x8xf32>
    %64 = arith.subf %27, %63 : vector<16x8xf32>
    %65 = vector.broadcast %51 : vector<1x8xf32> to vector<16x8xf32>
    %66 = arith.mulf %64, %65 : vector<16x8xf32>
    %c1_22 = arith.constant 1 : index
    %c0_23 = arith.constant 0 : index
    %c0_24 = arith.constant 0 : index
    %67 = vector.load %arg4[%c1_22, %c0_23, %c0_24] : memref<4x32x16xf32, #tpu.memory_space<vmem>>, vector<1x32x16xf32>
    %68 = vector.shape_cast %67 : vector<1x32x16xf32> to vector<32x16xf32>
    %69 = math.tanh %58 : vector<16x32xf32>
    %cst_25 = arith.constant dense<0.000000e+00> : vector<16x16xf32>
    %70 = tpu.matmul %69, %68, %cst_25 {dimension_numbers = #tpu.dot_dimension_numbers<[1], [0], [0], [1], [0, 0, 1, 1], [], []>} : vector<16x32xf32>, vector<32x16xf32>, vector<16x16xf32> -> vector<16x16xf32>
    %71 = vector.extract_strided_slice %70 {offsets = [0, 0], sizes = [16, 8], strides = [1, 1]} : vector<16x16xf32> to vector<16x8xf32>
    %72 = vector.broadcast %52 : vector<1x8xf32> to vector<16x8xf32>
    %73 = arith.addf %71, %72 : vector<16x8xf32>
    %74 = math.tanh %73 : vector<16x8xf32>
    %75 = vector.extract_strided_slice %70 {offsets = [0, 8], sizes = [16, 8], strides = [1, 1]} : vector<16x16xf32> to vector<16x8xf32>
    %76 = vector.broadcast %53 : vector<1x8xf32> to vector<16x8xf32>
    %77 = arith.addf %75, %76 : vector<16x8xf32>
    %78 = math.exp %74 : vector<16x8xf32>
    %79 = arith.mulf %66, %78 : vector<16x8xf32>
    %80 = arith.addf %79, %77 : vector<16x8xf32>
    %c2 = arith.constant 2 : index
    %c0_26 = arith.constant 0 : index
    %c0_27 = arith.constant 0 : index
    %81 = vector.load %arg5[%c2, %c0_26, %c0_27] : memref<4x8x8xf32, #tpu.memory_space<vmem>>, vector<1x8x8xf32>
    %82 = vector.shape_cast %81 : vector<1x8x8xf32> to vector<8x8xf32>
    %83 = vector.extract_strided_slice %82 {offsets = [0, 0], sizes = [1, 8], strides = [1, 1]} : vector<8x8xf32> to vector<1x8xf32>
    %84 = vector.extract_strided_slice %82 {offsets = [1, 0], sizes = [1, 8], strides = [1, 1]} : vector<8x8xf32> to vector<1x8xf32>
    %85 = vector.extract_strided_slice %82 {offsets = [2, 0], sizes = [1, 8], strides = [1, 1]} : vector<8x8xf32> to vector<1x8xf32>
    %86 = vector.extract_strided_slice %82 {offsets = [3, 0], sizes = [1, 8], strides = [1, 1]} : vector<8x8xf32> to vector<1x8xf32>
    %87 = vector.extract_strided_slice %82 {offsets = [6, 0], sizes = [1, 8], strides = [1, 1]} : vector<8x8xf32> to vector<1x8xf32>
    %88 = vector.extract_strided_slice %82 {offsets = [7, 0], sizes = [1, 8], strides = [1, 1]} : vector<8x8xf32> to vector<1x8xf32>
    %c2_28 = arith.constant 2 : index
    %c0_29 = arith.constant 0 : index
    %c0_30 = arith.constant 0 : index
    %89 = vector.load %arg3[%c2_28, %c0_29, %c0_30] : memref<8x8x32xf32, #tpu.memory_space<vmem>>, vector<1x8x32xf32>
    %90 = vector.shape_cast %89 : vector<1x8x32xf32> to vector<8x32xf32>
    %cst_31 = arith.constant dense<0.000000e+00> : vector<16x32xf32>
    %91 = tpu.matmul %80, %90, %cst_31 {dimension_numbers = #tpu.dot_dimension_numbers<[1], [0], [0], [1], [0, 0, 1, 1], [], []>} : vector<16x8xf32>, vector<8x32xf32>, vector<16x32xf32> -> vector<16x32xf32>
    %92 = vector.extract_strided_slice %10 {offsets = [0, 64], sizes = [16, 32], strides = [1, 1]} : vector<16x128xf32> to vector<16x32xf32>
    %93 = arith.addf %91, %92 : vector<16x32xf32>
    %94 = vector.broadcast %83 : vector<1x8xf32> to vector<16x8xf32>
    %95 = arith.subf %80, %94 : vector<16x8xf32>
    %96 = vector.broadcast %85 : vector<1x8xf32> to vector<16x8xf32>
    %97 = arith.mulf %95, %96 : vector<16x8xf32>
    %98 = vector.broadcast %84 : vector<1x8xf32> to vector<16x8xf32>
    %99 = arith.subf %62, %98 : vector<16x8xf32>
    %100 = vector.broadcast %86 : vector<1x8xf32> to vector<16x8xf32>
    %101 = arith.mulf %99, %100 : vector<16x8xf32>
    %c2_32 = arith.constant 2 : index
    %c0_33 = arith.constant 0 : index
    %c0_34 = arith.constant 0 : index
    %102 = vector.load %arg4[%c2_32, %c0_33, %c0_34] : memref<4x32x16xf32, #tpu.memory_space<vmem>>, vector<1x32x16xf32>
    %103 = vector.shape_cast %102 : vector<1x32x16xf32> to vector<32x16xf32>
    %104 = math.tanh %93 : vector<16x32xf32>
    %cst_35 = arith.constant dense<0.000000e+00> : vector<16x16xf32>
    %105 = tpu.matmul %104, %103, %cst_35 {dimension_numbers = #tpu.dot_dimension_numbers<[1], [0], [0], [1], [0, 0, 1, 1], [], []>} : vector<16x32xf32>, vector<32x16xf32>, vector<16x16xf32> -> vector<16x16xf32>
    %106 = vector.extract_strided_slice %105 {offsets = [0, 0], sizes = [16, 8], strides = [1, 1]} : vector<16x16xf32> to vector<16x8xf32>
    %107 = vector.broadcast %87 : vector<1x8xf32> to vector<16x8xf32>
    %108 = arith.addf %106, %107 : vector<16x8xf32>
    %109 = math.tanh %108 : vector<16x8xf32>
    %110 = vector.extract_strided_slice %105 {offsets = [0, 8], sizes = [16, 8], strides = [1, 1]} : vector<16x16xf32> to vector<16x8xf32>
    %111 = vector.broadcast %88 : vector<1x8xf32> to vector<16x8xf32>
    %112 = arith.addf %110, %111 : vector<16x8xf32>
    %113 = math.exp %109 : vector<16x8xf32>
    %114 = arith.mulf %101, %113 : vector<16x8xf32>
    %115 = arith.addf %114, %112 : vector<16x8xf32>
    %c3 = arith.constant 3 : index
    %c0_36 = arith.constant 0 : index
    %c0_37 = arith.constant 0 : index
    %116 = vector.load %arg5[%c3, %c0_36, %c0_37] : memref<4x8x8xf32, #tpu.memory_space<vmem>>, vector<1x8x8xf32>
    %117 = vector.shape_cast %116 : vector<1x8x8xf32> to vector<8x8xf32>
    %118 = vector.extract_strided_slice %117 {offsets = [0, 0], sizes = [1, 8], strides = [1, 1]} : vector<8x8xf32> to vector<1x8xf32>
    %119 = vector.extract_strided_slice %117 {offsets = [1, 0], sizes = [1, 8], strides = [1, 1]} : vector<8x8xf32> to vector<1x8xf32>
    %120 = vector.extract_strided_slice %117 {offsets = [2, 0], sizes = [1, 8], strides = [1, 1]} : vector<8x8xf32> to vector<1x8xf32>
    %121 = vector.extract_strided_slice %117 {offsets = [3, 0], sizes = [1, 8], strides = [1, 1]} : vector<8x8xf32> to vector<1x8xf32>
    %122 = vector.extract_strided_slice %117 {offsets = [6, 0], sizes = [1, 8], strides = [1, 1]} : vector<8x8xf32> to vector<1x8xf32>
    %123 = vector.extract_strided_slice %117 {offsets = [7, 0], sizes = [1, 8], strides = [1, 1]} : vector<8x8xf32> to vector<1x8xf32>
    %c3_38 = arith.constant 3 : index
    %c0_39 = arith.constant 0 : index
    %c0_40 = arith.constant 0 : index
    %124 = vector.load %arg3[%c3_38, %c0_39, %c0_40] : memref<8x8x32xf32, #tpu.memory_space<vmem>>, vector<1x8x32xf32>
    %125 = vector.shape_cast %124 : vector<1x8x32xf32> to vector<8x32xf32>
    %cst_41 = arith.constant dense<0.000000e+00> : vector<16x32xf32>
    %126 = tpu.matmul %115, %125, %cst_41 {dimension_numbers = #tpu.dot_dimension_numbers<[1], [0], [0], [1], [0, 0, 1, 1], [], []>} : vector<16x8xf32>, vector<8x32xf32>, vector<16x32xf32> -> vector<16x32xf32>
    %127 = vector.extract_strided_slice %10 {offsets = [0, 96], sizes = [16, 32], strides = [1, 1]} : vector<16x128xf32> to vector<16x32xf32>
    %128 = arith.addf %126, %127 : vector<16x32xf32>
    %129 = vector.broadcast %118 : vector<1x8xf32> to vector<16x8xf32>
    %130 = arith.subf %115, %129 : vector<16x8xf32>
    %131 = vector.broadcast %120 : vector<1x8xf32> to vector<16x8xf32>
    %132 = arith.mulf %130, %131 : vector<16x8xf32>
    %133 = vector.broadcast %119 : vector<1x8xf32> to vector<16x8xf32>
    %134 = arith.subf %97, %133 : vector<16x8xf32>
    %135 = vector.broadcast %121 : vector<1x8xf32> to vector<16x8xf32>
    %136 = arith.mulf %134, %135 : vector<16x8xf32>
    %c3_42 = arith.constant 3 : index
    %c0_43 = arith.constant 0 : index
    %c0_44 = arith.constant 0 : index
    %137 = vector.load %arg4[%c3_42, %c0_43, %c0_44] : memref<4x32x16xf32, #tpu.memory_space<vmem>>, vector<1x32x16xf32>
    %138 = vector.shape_cast %137 : vector<1x32x16xf32> to vector<32x16xf32>
    %139 = math.tanh %128 : vector<16x32xf32>
    %cst_45 = arith.constant dense<0.000000e+00> : vector<16x16xf32>
    %140 = tpu.matmul %139, %138, %cst_45 {dimension_numbers = #tpu.dot_dimension_numbers<[1], [0], [0], [1], [0, 0, 1, 1], [], []>} : vector<16x32xf32>, vector<32x16xf32>, vector<16x16xf32> -> vector<16x16xf32>
    %141 = vector.extract_strided_slice %140 {offsets = [0, 0], sizes = [16, 8], strides = [1, 1]} : vector<16x16xf32> to vector<16x8xf32>
    %142 = vector.broadcast %122 : vector<1x8xf32> to vector<16x8xf32>
    %143 = arith.addf %141, %142 : vector<16x8xf32>
    %144 = math.tanh %143 : vector<16x8xf32>
    %145 = vector.extract_strided_slice %140 {offsets = [0, 8], sizes = [16, 8], strides = [1, 1]} : vector<16x16xf32> to vector<16x8xf32>
    %146 = vector.broadcast %123 : vector<1x8xf32> to vector<16x8xf32>
    %147 = arith.addf %145, %146 : vector<16x8xf32>
    %148 = math.exp %144 : vector<16x8xf32>
    %149 = arith.mulf %136, %148 : vector<16x8xf32>
    %150 = arith.addf %149, %147 : vector<16x8xf32>
    %c3_46 = arith.constant 3 : index
    %c0_47 = arith.constant 0 : index
    %c0_48 = arith.constant 0 : index
    %151 = vector.load %arg5[%c3_46, %c0_47, %c0_48] : memref<4x8x8xf32, #tpu.memory_space<vmem>>, vector<1x8x8xf32>
    %152 = vector.shape_cast %151 : vector<1x8x8xf32> to vector<8x8xf32>
    %153 = vector.extract_strided_slice %152 {offsets = [0, 0], sizes = [1, 8], strides = [1, 1]} : vector<8x8xf32> to vector<1x8xf32>
    %154 = vector.extract_strided_slice %152 {offsets = [1, 0], sizes = [1, 8], strides = [1, 1]} : vector<8x8xf32> to vector<1x8xf32>
    %155 = vector.extract_strided_slice %152 {offsets = [4, 0], sizes = [1, 8], strides = [1, 1]} : vector<8x8xf32> to vector<1x8xf32>
    %156 = vector.extract_strided_slice %152 {offsets = [5, 0], sizes = [1, 8], strides = [1, 1]} : vector<8x8xf32> to vector<1x8xf32>
    %157 = vector.extract_strided_slice %152 {offsets = [6, 0], sizes = [1, 8], strides = [1, 1]} : vector<8x8xf32> to vector<1x8xf32>
    %158 = vector.extract_strided_slice %152 {offsets = [7, 0], sizes = [1, 8], strides = [1, 1]} : vector<8x8xf32> to vector<1x8xf32>
    %c7 = arith.constant 7 : index
    %c0_49 = arith.constant 0 : index
    %c0_50 = arith.constant 0 : index
    %159 = vector.load %arg3[%c7, %c0_49, %c0_50] : memref<8x8x32xf32, #tpu.memory_space<vmem>>, vector<1x8x32xf32>
    %160 = vector.shape_cast %159 : vector<1x8x32xf32> to vector<8x32xf32>
    %cst_51 = arith.constant dense<0.000000e+00> : vector<16x32xf32>
    %161 = tpu.matmul %132, %160, %cst_51 {dimension_numbers = #tpu.dot_dimension_numbers<[1], [0], [0], [1], [0, 0, 1, 1], [], []>} : vector<16x8xf32>, vector<8x32xf32>, vector<16x32xf32> -> vector<16x32xf32>
    %162 = vector.extract_strided_slice %7 {offsets = [0, 96], sizes = [1, 32], strides = [1, 1]} : vector<1x128xf32> to vector<1x32xf32>
    %163 = vector.broadcast %162 : vector<1x32xf32> to vector<16x32xf32>
    %164 = arith.addf %161, %163 : vector<16x32xf32>
    %c3_52 = arith.constant 3 : index
    %c0_53 = arith.constant 0 : index
    %c0_54 = arith.constant 0 : index
    %165 = vector.load %arg4[%c3_52, %c0_53, %c0_54] : memref<4x32x16xf32, #tpu.memory_space<vmem>>, vector<1x32x16xf32>
    %166 = vector.shape_cast %165 : vector<1x32x16xf32> to vector<32x16xf32>
    %167 = math.tanh %164 : vector<16x32xf32>
    %cst_55 = arith.constant dense<0.000000e+00> : vector<16x16xf32>
    %168 = tpu.matmul %167, %166, %cst_55 {dimension_numbers = #tpu.dot_dimension_numbers<[1], [0], [0], [1], [0, 0, 1, 1], [], []>} : vector<16x32xf32>, vector<32x16xf32>, vector<16x16xf32> -> vector<16x16xf32>
    %169 = vector.extract_strided_slice %168 {offsets = [0, 0], sizes = [16, 8], strides = [1, 1]} : vector<16x16xf32> to vector<16x8xf32>
    %170 = vector.broadcast %157 : vector<1x8xf32> to vector<16x8xf32>
    %171 = arith.addf %169, %170 : vector<16x8xf32>
    %172 = math.tanh %171 : vector<16x8xf32>
    %173 = vector.extract_strided_slice %168 {offsets = [0, 8], sizes = [16, 8], strides = [1, 1]} : vector<16x16xf32> to vector<16x8xf32>
    %174 = vector.broadcast %158 : vector<1x8xf32> to vector<16x8xf32>
    %175 = arith.addf %173, %174 : vector<16x8xf32>
    %176 = arith.subf %150, %175 : vector<16x8xf32>
    %cst_56 = arith.constant 0.000000e+00 : f32
    %177 = vector.broadcast %cst_56 : f32 to vector<16x8xf32>
    %178 = arith.subf %177, %172 : vector<16x8xf32>
    %179 = math.exp %178 : vector<16x8xf32>
    %180 = arith.mulf %176, %179 : vector<16x8xf32>
    %181 = vector.broadcast %155 : vector<1x8xf32> to vector<16x8xf32>
    %182 = arith.mulf %132, %181 : vector<16x8xf32>
    %183 = vector.broadcast %153 : vector<1x8xf32> to vector<16x8xf32>
    %184 = arith.addf %182, %183 : vector<16x8xf32>
    %185 = vector.broadcast %156 : vector<1x8xf32> to vector<16x8xf32>
    %186 = arith.mulf %180, %185 : vector<16x8xf32>
    %187 = vector.broadcast %154 : vector<1x8xf32> to vector<16x8xf32>
    %188 = arith.addf %186, %187 : vector<16x8xf32>
    %c2_57 = arith.constant 2 : index
    %c0_58 = arith.constant 0 : index
    %c0_59 = arith.constant 0 : index
    %189 = vector.load %arg5[%c2_57, %c0_58, %c0_59] : memref<4x8x8xf32, #tpu.memory_space<vmem>>, vector<1x8x8xf32>
    %190 = vector.shape_cast %189 : vector<1x8x8xf32> to vector<8x8xf32>
    %191 = vector.extract_strided_slice %190 {offsets = [0, 0], sizes = [1, 8], strides = [1, 1]} : vector<8x8xf32> to vector<1x8xf32>
    %192 = vector.extract_strided_slice %190 {offsets = [1, 0], sizes = [1, 8], strides = [1, 1]} : vector<8x8xf32> to vector<1x8xf32>
    %193 = vector.extract_strided_slice %190 {offsets = [4, 0], sizes = [1, 8], strides = [1, 1]} : vector<8x8xf32> to vector<1x8xf32>
    %194 = vector.extract_strided_slice %190 {offsets = [5, 0], sizes = [1, 8], strides = [1, 1]} : vector<8x8xf32> to vector<1x8xf32>
    %195 = vector.extract_strided_slice %190 {offsets = [6, 0], sizes = [1, 8], strides = [1, 1]} : vector<8x8xf32> to vector<1x8xf32>
    %196 = vector.extract_strided_slice %190 {offsets = [7, 0], sizes = [1, 8], strides = [1, 1]} : vector<8x8xf32> to vector<1x8xf32>
    %c6 = arith.constant 6 : index
    %c0_60 = arith.constant 0 : index
    %c0_61 = arith.constant 0 : index
    %197 = vector.load %arg3[%c6, %c0_60, %c0_61] : memref<8x8x32xf32, #tpu.memory_space<vmem>>, vector<1x8x32xf32>
    %198 = vector.shape_cast %197 : vector<1x8x32xf32> to vector<8x32xf32>
    %cst_62 = arith.constant dense<0.000000e+00> : vector<16x32xf32>
    %199 = tpu.matmul %188, %198, %cst_62 {dimension_numbers = #tpu.dot_dimension_numbers<[1], [0], [0], [1], [0, 0, 1, 1], [], []>} : vector<16x8xf32>, vector<8x32xf32>, vector<16x32xf32> -> vector<16x32xf32>
    %200 = vector.extract_strided_slice %7 {offsets = [0, 64], sizes = [1, 32], strides = [1, 1]} : vector<1x128xf32> to vector<1x32xf32>
    %201 = vector.broadcast %200 : vector<1x32xf32> to vector<16x32xf32>
    %202 = arith.addf %199, %201 : vector<16x32xf32>
    %c2_63 = arith.constant 2 : index
    %c0_64 = arith.constant 0 : index
    %c0_65 = arith.constant 0 : index
    %203 = vector.load %arg4[%c2_63, %c0_64, %c0_65] : memref<4x32x16xf32, #tpu.memory_space<vmem>>, vector<1x32x16xf32>
    %204 = vector.shape_cast %203 : vector<1x32x16xf32> to vector<32x16xf32>
    %205 = math.tanh %202 : vector<16x32xf32>
    %cst_66 = arith.constant dense<0.000000e+00> : vector<16x16xf32>
    %206 = tpu.matmul %205, %204, %cst_66 {dimension_numbers = #tpu.dot_dimension_numbers<[1], [0], [0], [1], [0, 0, 1, 1], [], []>} : vector<16x32xf32>, vector<32x16xf32>, vector<16x16xf32> -> vector<16x16xf32>
    %207 = vector.extract_strided_slice %206 {offsets = [0, 0], sizes = [16, 8], strides = [1, 1]} : vector<16x16xf32> to vector<16x8xf32>
    %208 = vector.broadcast %195 : vector<1x8xf32> to vector<16x8xf32>
    %209 = arith.addf %207, %208 : vector<16x8xf32>
    %210 = math.tanh %209 : vector<16x8xf32>
    %211 = vector.extract_strided_slice %206 {offsets = [0, 8], sizes = [16, 8], strides = [1, 1]} : vector<16x16xf32> to vector<16x8xf32>
    %212 = vector.broadcast %196 : vector<1x8xf32> to vector<16x8xf32>
    %213 = arith.addf %211, %212 : vector<16x8xf32>
    %214 = arith.subf %184, %213 : vector<16x8xf32>
    %cst_67 = arith.constant 0.000000e+00 : f32
    %215 = vector.broadcast %cst_67 : f32 to vector<16x8xf32>
    %216 = arith.subf %215, %210 : vector<16x8xf32>
    %217 = math.exp %216 : vector<16x8xf32>
    %218 = arith.mulf %214, %217 : vector<16x8xf32>
    %219 = vector.broadcast %193 : vector<1x8xf32> to vector<16x8xf32>
    %220 = arith.mulf %188, %219 : vector<16x8xf32>
    %221 = vector.broadcast %191 : vector<1x8xf32> to vector<16x8xf32>
    %222 = arith.addf %220, %221 : vector<16x8xf32>
    %223 = vector.broadcast %194 : vector<1x8xf32> to vector<16x8xf32>
    %224 = arith.mulf %218, %223 : vector<16x8xf32>
    %225 = vector.broadcast %192 : vector<1x8xf32> to vector<16x8xf32>
    %226 = arith.addf %224, %225 : vector<16x8xf32>
    %c1_68 = arith.constant 1 : index
    %c0_69 = arith.constant 0 : index
    %c0_70 = arith.constant 0 : index
    %227 = vector.load %arg5[%c1_68, %c0_69, %c0_70] : memref<4x8x8xf32, #tpu.memory_space<vmem>>, vector<1x8x8xf32>
    %228 = vector.shape_cast %227 : vector<1x8x8xf32> to vector<8x8xf32>
    %229 = vector.extract_strided_slice %228 {offsets = [0, 0], sizes = [1, 8], strides = [1, 1]} : vector<8x8xf32> to vector<1x8xf32>
    %230 = vector.extract_strided_slice %228 {offsets = [1, 0], sizes = [1, 8], strides = [1, 1]} : vector<8x8xf32> to vector<1x8xf32>
    %231 = vector.extract_strided_slice %228 {offsets = [4, 0], sizes = [1, 8], strides = [1, 1]} : vector<8x8xf32> to vector<1x8xf32>
    %232 = vector.extract_strided_slice %228 {offsets = [5, 0], sizes = [1, 8], strides = [1, 1]} : vector<8x8xf32> to vector<1x8xf32>
    %233 = vector.extract_strided_slice %228 {offsets = [6, 0], sizes = [1, 8], strides = [1, 1]} : vector<8x8xf32> to vector<1x8xf32>
    %234 = vector.extract_strided_slice %228 {offsets = [7, 0], sizes = [1, 8], strides = [1, 1]} : vector<8x8xf32> to vector<1x8xf32>
    %c5 = arith.constant 5 : index
    %c0_71 = arith.constant 0 : index
    %c0_72 = arith.constant 0 : index
    %235 = vector.load %arg3[%c5, %c0_71, %c0_72] : memref<8x8x32xf32, #tpu.memory_space<vmem>>, vector<1x8x32xf32>
    %236 = vector.shape_cast %235 : vector<1x8x32xf32> to vector<8x32xf32>
    %cst_73 = arith.constant dense<0.000000e+00> : vector<16x32xf32>
    %237 = tpu.matmul %226, %236, %cst_73 {dimension_numbers = #tpu.dot_dimension_numbers<[1], [0], [0], [1], [0, 0, 1, 1], [], []>} : vector<16x8xf32>, vector<8x32xf32>, vector<16x32xf32> -> vector<16x32xf32>
    %238 = vector.extract_strided_slice %7 {offsets = [0, 32], sizes = [1, 32], strides = [1, 1]} : vector<1x128xf32> to vector<1x32xf32>
    %239 = vector.broadcast %238 : vector<1x32xf32> to vector<16x32xf32>
    %240 = arith.addf %237, %239 : vector<16x32xf32>
    %c1_74 = arith.constant 1 : index
    %c0_75 = arith.constant 0 : index
    %c0_76 = arith.constant 0 : index
    %241 = vector.load %arg4[%c1_74, %c0_75, %c0_76] : memref<4x32x16xf32, #tpu.memory_space<vmem>>, vector<1x32x16xf32>
    %242 = vector.shape_cast %241 : vector<1x32x16xf32> to vector<32x16xf32>
    %243 = math.tanh %240 : vector<16x32xf32>
    %cst_77 = arith.constant dense<0.000000e+00> : vector<16x16xf32>
    %244 = tpu.matmul %243, %242, %cst_77 {dimension_numbers = #tpu.dot_dimension_numbers<[1], [0], [0], [1], [0, 0, 1, 1], [], []>} : vector<16x32xf32>, vector<32x16xf32>, vector<16x16xf32> -> vector<16x16xf32>
    %245 = vector.extract_strided_slice %244 {offsets = [0, 0], sizes = [16, 8], strides = [1, 1]} : vector<16x16xf32> to vector<16x8xf32>
    %246 = vector.broadcast %233 : vector<1x8xf32> to vector<16x8xf32>
    %247 = arith.addf %245, %246 : vector<16x8xf32>
    %248 = math.tanh %247 : vector<16x8xf32>
    %249 = vector.extract_strided_slice %244 {offsets = [0, 8], sizes = [16, 8], strides = [1, 1]} : vector<16x16xf32> to vector<16x8xf32>
    %250 = vector.broadcast %234 : vector<1x8xf32> to vector<16x8xf32>
    %251 = arith.addf %249, %250 : vector<16x8xf32>
    %252 = arith.subf %222, %251 : vector<16x8xf32>
    %cst_78 = arith.constant 0.000000e+00 : f32
    %253 = vector.broadcast %cst_78 : f32 to vector<16x8xf32>
    %254 = arith.subf %253, %248 : vector<16x8xf32>
    %255 = math.exp %254 : vector<16x8xf32>
    %256 = arith.mulf %252, %255 : vector<16x8xf32>
    %257 = vector.broadcast %231 : vector<1x8xf32> to vector<16x8xf32>
    %258 = arith.mulf %226, %257 : vector<16x8xf32>
    %259 = vector.broadcast %229 : vector<1x8xf32> to vector<16x8xf32>
    %260 = arith.addf %258, %259 : vector<16x8xf32>
    %261 = vector.broadcast %232 : vector<1x8xf32> to vector<16x8xf32>
    %262 = arith.mulf %256, %261 : vector<16x8xf32>
    %263 = vector.broadcast %230 : vector<1x8xf32> to vector<16x8xf32>
    %264 = arith.addf %262, %263 : vector<16x8xf32>
    %c0_79 = arith.constant 0 : index
    %c0_80 = arith.constant 0 : index
    %c0_81 = arith.constant 0 : index
    %265 = vector.load %arg5[%c0_79, %c0_80, %c0_81] : memref<4x8x8xf32, #tpu.memory_space<vmem>>, vector<1x8x8xf32>
    %266 = vector.shape_cast %265 : vector<1x8x8xf32> to vector<8x8xf32>
    %267 = vector.extract_strided_slice %266 {offsets = [0, 0], sizes = [1, 8], strides = [1, 1]} : vector<8x8xf32> to vector<1x8xf32>
    %268 = vector.extract_strided_slice %266 {offsets = [1, 0], sizes = [1, 8], strides = [1, 1]} : vector<8x8xf32> to vector<1x8xf32>
    %269 = vector.extract_strided_slice %266 {offsets = [4, 0], sizes = [1, 8], strides = [1, 1]} : vector<8x8xf32> to vector<1x8xf32>
    %270 = vector.extract_strided_slice %266 {offsets = [5, 0], sizes = [1, 8], strides = [1, 1]} : vector<8x8xf32> to vector<1x8xf32>
    %271 = vector.extract_strided_slice %266 {offsets = [6, 0], sizes = [1, 8], strides = [1, 1]} : vector<8x8xf32> to vector<1x8xf32>
    %272 = vector.extract_strided_slice %266 {offsets = [7, 0], sizes = [1, 8], strides = [1, 1]} : vector<8x8xf32> to vector<1x8xf32>
    %c4 = arith.constant 4 : index
    %c0_82 = arith.constant 0 : index
    %c0_83 = arith.constant 0 : index
    %273 = vector.load %arg3[%c4, %c0_82, %c0_83] : memref<8x8x32xf32, #tpu.memory_space<vmem>>, vector<1x8x32xf32>
    %274 = vector.shape_cast %273 : vector<1x8x32xf32> to vector<8x32xf32>
    %cst_84 = arith.constant dense<0.000000e+00> : vector<16x32xf32>
    %275 = tpu.matmul %264, %274, %cst_84 {dimension_numbers = #tpu.dot_dimension_numbers<[1], [0], [0], [1], [0, 0, 1, 1], [], []>} : vector<16x8xf32>, vector<8x32xf32>, vector<16x32xf32> -> vector<16x32xf32>
    %276 = vector.extract_strided_slice %7 {offsets = [0, 0], sizes = [1, 32], strides = [1, 1]} : vector<1x128xf32> to vector<1x32xf32>
    %277 = vector.broadcast %276 : vector<1x32xf32> to vector<16x32xf32>
    %278 = arith.addf %275, %277 : vector<16x32xf32>
    %c0_85 = arith.constant 0 : index
    %c0_86 = arith.constant 0 : index
    %c0_87 = arith.constant 0 : index
    %279 = vector.load %arg4[%c0_85, %c0_86, %c0_87] : memref<4x32x16xf32, #tpu.memory_space<vmem>>, vector<1x32x16xf32>
    %280 = vector.shape_cast %279 : vector<1x32x16xf32> to vector<32x16xf32>
    %281 = math.tanh %278 : vector<16x32xf32>
    %cst_88 = arith.constant dense<0.000000e+00> : vector<16x16xf32>
    %282 = tpu.matmul %281, %280, %cst_88 {dimension_numbers = #tpu.dot_dimension_numbers<[1], [0], [0], [1], [0, 0, 1, 1], [], []>} : vector<16x32xf32>, vector<32x16xf32>, vector<16x16xf32> -> vector<16x16xf32>
    %283 = vector.extract_strided_slice %282 {offsets = [0, 0], sizes = [16, 8], strides = [1, 1]} : vector<16x16xf32> to vector<16x8xf32>
    %284 = vector.broadcast %271 : vector<1x8xf32> to vector<16x8xf32>
    %285 = arith.addf %283, %284 : vector<16x8xf32>
    %286 = math.tanh %285 : vector<16x8xf32>
    %287 = vector.extract_strided_slice %282 {offsets = [0, 8], sizes = [16, 8], strides = [1, 1]} : vector<16x16xf32> to vector<16x8xf32>
    %288 = vector.broadcast %272 : vector<1x8xf32> to vector<16x8xf32>
    %289 = arith.addf %287, %288 : vector<16x8xf32>
    %290 = arith.subf %260, %289 : vector<16x8xf32>
    %cst_89 = arith.constant 0.000000e+00 : f32
    %291 = vector.broadcast %cst_89 : f32 to vector<16x8xf32>
    %292 = arith.subf %291, %286 : vector<16x8xf32>
    %293 = math.exp %292 : vector<16x8xf32>
    %294 = arith.mulf %290, %293 : vector<16x8xf32>
    %295 = vector.broadcast %269 : vector<1x8xf32> to vector<16x8xf32>
    %296 = arith.mulf %264, %295 : vector<16x8xf32>
    %297 = vector.broadcast %267 : vector<1x8xf32> to vector<16x8xf32>
    %298 = arith.addf %296, %297 : vector<16x8xf32>
    %299 = vector.broadcast %270 : vector<1x8xf32> to vector<16x8xf32>
    %300 = arith.mulf %294, %299 : vector<16x8xf32>
    %301 = vector.broadcast %268 : vector<1x8xf32> to vector<16x8xf32>
    %302 = arith.addf %300, %301 : vector<16x8xf32>
    %303 = tpu.concatenate %298, %302 in 1 : vector<16x8xf32>, vector<16x8xf32> -> vector<16x16xf32>
    %c0_90 = arith.constant 0 : index
    %c0_91 = arith.constant 0 : index
    %304 = vector.load %arg6[%c0_90, %c0_91] : memref<16x16xf32, #tpu.memory_space<vmem>>, vector<16x16xf32>
    tpu.vector_store %arg6[%c0_90, %c0_91], %303 {strides = array<i32>} : memref<16x16xf32, #tpu.memory_space<vmem>>, vector<16x16xf32>,
    return
  }
}

</mosaic_0001>

<llo_original>
// kernel: scvi_optim_trans_forward.1
$region0: #{scvi_optim_trans_forward.1}
  #allocation0 [shape = 'u32[]', space=smem, size = 0x4, offset = 0x4, fixed_abs, tag = 'smem constant byte address 0x4 - core index']
  #allocation1 [shape = 'u32[144,128]{1,0:T(1,128)}', space=vmem, size = 0x12000, scoped, tag = 'internal scratch']
  %s0 = inlined_call_operand.vmem [shape: f32[16,16], index: 0, kind: input, shape index: {}]
  %s1 = inlined_call_operand.vmem [shape: f32[16,16], index: 1, kind: input, shape index: {}]
  %s2 = inlined_call_operand.vmem [shape: f32[18,128], index: 2, kind: input, shape index: {}]
  %s3 = inlined_call_operand.vmem [shape: f32[8,8,32], index: 3, kind: input, shape index: {}]
  %s4 = inlined_call_operand.vmem [shape: f32[4,32,16], index: 4, kind: input, shape index: {}]
  %s5 = inlined_call_operand.vmem [shape: f32[4,8,8], index: 5, kind: input, shape index: {}]
  %s6 = inlined_call_operand.hbm [shape: f32[16,16], index: 6, kind: output, shape index: {}]
  %s7 = sld [smem:[#allocation0]]
  $region34: #{scvi_optim_trans_forward.1} parent=0
    _
  %s9 = ssub.s32 1, %s7
  %s10 = scalar_select 0, %s9, %s7
  $region1: #{scvi_optim_trans_forward.1} parent=0
    #allocation2 [shape = 'u8[8192]{0}', space=vmem, size = 0x2000, scoped, tag = 'output window, operand 0, single buffered']
    #allocation3 [shape = 's32[1]{0}', space=sflag, size = 0x4, scoped, tag = 'scoped memory for scvi_optim_trans_forward.1']
    %11 = vsyncpa [#allocation3], 0
    // Predicated region
    $region2: #{scvi_optim_trans_forward.1} parent=1 // pred_check
      _
    $region3: #{scvi_optim_trans_forward.1} parent=1 // pred_check_branch
      %13 = sbr.rel (0) target = $region5
    $region4: #{scvi_optim_trans_forward.1} parent=1 // pred_region
      _
    $region5: #{scvi_optim_trans_forward.1} parent=1 // pred_fallthru
      _
    // Predicated region
    $region6: #{scvi_optim_trans_forward.1} parent=1 // pred_check
      _
    $region7: #{scvi_optim_trans_forward.1} parent=1 // pred_check_branch
      %15 = sbr.rel (0) target = $region9
    $region8: #{scvi_optim_trans_forward.1} parent=1 // pred_region
      _
    $region9: #{scvi_optim_trans_forward.1} parent=1 // pred_fallthru
      _
    // Predicated region
    $region10: #{scvi_optim_trans_forward.1} parent=1 // pred_check
      _
    $region11: #{scvi_optim_trans_forward.1} parent=1 // pred_check_branch
      %17 = sbr.rel (0) target = $region13
    $region12: #{scvi_optim_trans_forward.1} parent=1 // pred_region
      _
    $region13: #{scvi_optim_trans_forward.1} parent=1 // pred_fallthru
      _
    // Predicated region
    $region14: #{scvi_optim_trans_forward.1} parent=1 // pred_check
      _
    $region15: #{scvi_optim_trans_forward.1} parent=1 // pred_check_branch
      %19 = sbr.rel (0) target = $region17
    $region16: #{scvi_optim_trans_forward.1} parent=1 // pred_region
      _
    $region17: #{scvi_optim_trans_forward.1} parent=1 // pred_fallthru
      _
    // Predicated region
    $region18: #{scvi_optim_trans_forward.1} parent=1 // pred_check
      _
    $region19: #{scvi_optim_trans_forward.1} parent=1 // pred_check_branch
      %21 = sbr.rel (0) target = $region21
    $region20: #{scvi_optim_trans_forward.1} parent=1 // pred_region
      _
    $region21: #{scvi_optim_trans_forward.1} parent=1 // pred_fallthru
      _
    // Predicated region
    $region22: #{scvi_optim_trans_forward.1} parent=1 // pred_check
      _
    $region23: #{scvi_optim_trans_forward.1} parent=1 // pred_check_branch
      %23 = sbr.rel (0) target = $region25
    $region24: #{scvi_optim_trans_forward.1} parent=1 // pred_region
      _
    $region25: #{scvi_optim_trans_forward.1} parent=1 // pred_fallthru
      _
    %v24 = vld [vmem:[%s0] sm:$0xff]
    %v25 = vld [vmem:[%s0 + $0x8] sm:$0xff]
    %v26 = vld [vmem:[%s1] sm:$0xff]
    %v27 = vld [vmem:[%s1 + $0x8] sm:$0xff]
    %v28 = vld [vmem:[%s2] sm:$0xff]
    %v29 = vld [vmem:[%s2 + $0x8] sm:$0xff]
    %v30 = vld [vmem:[%s2 + $0x10] sm:$0x3]
    %v31 = vlaneseq
    %v32 = vshrl.u32 %v31, 7
    %v33 = vsub.s32 0, %v32
    %v34 = vrot.slane %v30, %v33
    %vm35 = vcmask 130048
    %v37 = vsel %vm35, %v26, 0
    %v40 = vsel %vm35, %v27, 0
    %42 = vmatprep.subr.mxu0 0.0
    %43 = vmatpush1.msra.mxu0 %v28
    %44 = vmatprep.subr.mxu0 0.0
    %45 = vmatpush1.msra.mxu0 %v29
    %46 = vmatprep.subr.mxu0 0.0
    %47 = vmatpush1.msra.mxu0 0.0
    %48 = vmatprep.subr.mxu0 0.0
    %49 = vmatpush1.msra.mxu0 0.0
    %50 = vmatprep.subr.mxu0 0.0
    %51 = vmatpush1.msra.mxu0 0.0
    %52 = vmatprep.subr.mxu0 0.0
    %53 = vmatpush1.msra.mxu0 0.0
    %54 = vmatprep.subr.mxu0 0.0
    %55 = vmatpush1.msra.mxu0 0.0
    %56 = vmatprep.subr.mxu0 0.0
    %57 = vmatpush1.msra.mxu0 0.0
    %58 = vmatprep.subr.mxu0 0.0
    %59 = vmatpush1.msra.mxu0 0.0
    %60 = vmatprep.subr.mxu0 0.0
    %61 = vmatpush1.msra.mxu0 0.0
    %62 = vmatprep.subr.mxu0 0.0
    %63 = vmatpush1.msra.mxu0 0.0
    %64 = vmatprep.subr.mxu0 0.0
    %65 = vmatpush1.msra.mxu0 0.0
    %66 = vmatprep.subr.mxu0 0.0
    %67 = vmatpush1.msra.mxu0 0.0
    %68 = vmatprep.subr.mxu0 0.0
    %69 = vmatpush1.msra.mxu0 0.0
    %70 = vmatprep.subr.mxu0 0.0
    %71 = vmatpush1.msra.mxu0 0.0
    %72 = vmatprep.subr.mxu0 0.0
    %73 = vmatpush1.msra.mxu0 0.0
    %74 = vmatprep.subr.mxu0 0.0
    %75 = vmatpush1.msra.mxu0 0.0
    %76 = vmatprep.subr.mxu0 0.0
    %77 = vmatpush1.msra.mxu0 0.0
    %78 = vmatprep.subr.mxu0 0.0
    %79 = vmatpush1.msra.mxu0 0.0
    %80 = vmatprep.subr.mxu0 0.0
    %81 = vmatpush1.msra.mxu0 0.0
    %82 = vmatprep.subr.mxu0 0.0
    %83 = vmatpush1.msra.mxu0 0.0
    %84 = vmatprep.subr.mxu0 0.0
    %85 = vmatpush1.msra.mxu0 0.0
    %86 = vmatprep.subr.mxu0 0.0
    %87 = vmatpush1.msra.mxu0 0.0
    %88 = vmatprep.subr.mxu0 0.0
    %89 = vmatpush1.msra.mxu0 0.0
    %90 = vmatprep.subr.mxu0 0.0
    %91 = vmatpush1.msra.mxu0 0.0
    %92 = vmatprep.subr.mxu0 0.0
    %93 = vmatpush1.msra.mxu0 0.0
    %94 = vmatprep.subr.mxu0 0.0
    %95 = vmatpush1.msra.mxu0 0.0
    %96 = vmatprep.subr.mxu0 0.0
    %97 = vmatpush1.msra.mxu0 0.0
    %98 = vmatprep.subr.mxu0 0.0
    %99 = vmatpush1.msra.mxu0 0.0
    %100 = vmatprep.subr.mxu0 0.0
    %101 = vmatpush1.msra.mxu0 0.0
    %102 = vmatprep.subr.mxu0 0.0
    %103 = vmatpush1.msra.mxu0 0.0
    %104 = vmatprep.subr.mxu0 0.0
    %105 = vmatpush1.msra.mxu0 0.0
    %106 = vmatprep.mubr.f32.mxu0 0.0
    %107 = vmatmul.mubr.f32.gmra.mrb[0].mxu0 %v37
    %v108 = vpop.f32.mrb[0].mxu0
    %v109 = vadd.f32 %v34, %v108
    %v110 = vpop.f32.mrb[0].mxu0
    %111 = vmatprep.mubr.f32.mxu0 0.0
    %112 = vmatmul.mubr.f32.gmra.mrb[0].mxu0 %v40
    %v113 = vpop.f32.mrb[0].mxu0
    %v114 = vadd.f32 %v34, %v113
    %v115 = vpop.f32.mrb[0].mxu0
    %116 = vdwg.mxu0
    %v117 = vld [vmem:[%s5] sm:$0xff]
    %v118 = vld [vmem:[%s3] sm:$0xff]
    %vm119 = vcmask 64512
    %v121 = vsel %vm119, %v24, 0
    %v124 = vsel %vm119, %v25, 0
    %126 = vmatprep.subr.mxu0 0.0
    %127 = vmatpush1.msra.mxu0 %v118
    %128 = vmatprep.subr.mxu0 0.0
    %129 = vmatpush1.msra.mxu0 0.0
    %130 = vmatprep.subr.mxu0 0.0
    %131 = vmatpush1.msra.mxu0 0.0
    %132 = vmatprep.subr.mxu0 0.0
    %133 = vmatpush1.msra.mxu0 0.0
    %134 = vmatprep.subr.mxu0 0.0
    %135 = vmatpush1.msra.mxu0 0.0
    %136 = vmatprep.subr.mxu0 0.0
    %137 = vmatpush1.msra.mxu0 0.0
    %138 = vmatprep.subr.mxu0 0.0
    %139 = vmatpush1.msra.mxu0 0.0
    %140 = vmatprep.subr.mxu0 0.0
    %141 = vmatpush1.msra.mxu0 0.0
    %142 = vmatprep.subr.mxu0 0.0
    %143 = vmatpush1.msra.mxu0 0.0
    %144 = vmatprep.subr.mxu0 0.0
    %145 = vmatpush1.msra.mxu0 0.0
    %146 = vmatprep.subr.mxu0 0.0
    %147 = vmatpush1.msra.mxu0 0.0
    %148 = vmatprep.subr.mxu0 0.0
    %149 = vmatpush1.msra.mxu0 0.0
    %150 = vmatprep.subr.mxu0 0.0
    %151 = vmatpush1.msra.mxu0 0.0
    %152 = vmatprep.subr.mxu0 0.0
    %153 = vmatpush1.msra.mxu0 0.0
    %154 = vmatprep.subr.mxu0 0.0
    %155 = vmatpush1.msra.mxu0 0.0
    %156 = vmatprep.subr.mxu0 0.0
    %157 = vmatpush1.msra.mxu0 0.0
    %158 = vmatprep.subr.mxu0 0.0
    %159 = vmatpush1.msra.mxu0 0.0
    %160 = vmatprep.subr.mxu0 0.0
    %161 = vmatpush1.msra.mxu0 0.0
    %162 = vmatprep.subr.mxu0 0.0
    %163 = vmatpush1.msra.mxu0 0.0
    %164 = vmatprep.subr.mxu0 0.0
    %165 = vmatpush1.msra.mxu0 0.0
    %166 = vmatprep.subr.mxu0 0.0
    %167 = vmatpush1.msra.mxu0 0.0
    %168 = vmatprep.subr.mxu0 0.0
    %169 = vmatpush1.msra.mxu0 0.0
    %170 = vmatprep.subr.mxu0 0.0
    %171 = vmatpush1.msra.mxu0 0.0
    %172 = vmatprep.subr.mxu0 0.0
    %173 = vmatpush1.msra.mxu0 0.0
    %174 = vmatprep.subr.mxu0 0.0
    %175 = vmatpush1.msra.mxu0 0.0
    %176 = vmatprep.subr.mxu0 0.0
    %177 = vmatpush1.msra.mxu0 0.0
    %178 = vmatprep.subr.mxu0 0.0
    %179 = vmatpush1.msra.mxu0 0.0
    %180 = vmatprep.subr.mxu0 0.0
    %181 = vmatpush1.msra.mxu0 0.0
    %182 = vmatprep.subr.mxu0 0.0
    %183 = vmatpush1.msra.mxu0 0.0
    %184 = vmatprep.subr.mxu0 0.0
    %185 = vmatpush1.msra.mxu0 0.0
    %186 = vmatprep.subr.mxu0 0.0
    %187 = vmatpush1.msra.mxu0 0.0
    %188 = vmatprep.subr.mxu0 0.0
    %189 = vmatpush1.msra.mxu0 0.0
    %190 = vmatprep.mubr.f32.mxu0 0.0
    %191 = vmatmul.mubr.f32.gmra.mrb[0].mxu0 %v121
    %v192 = vpop.f32.mrb[0].mxu0
    %v193 = vadd.f32 %v109, %v192
    %v194 = vpop.f32.mrb[0].mxu0
    %195 = vmatprep.mubr.f32.mxu0 0.0
    %196 = vmatmul.mubr.f32.gmra.mrb[0].mxu0 %v124
    %v197 = vpop.f32.mrb[0].mxu0
    %v198 = vadd.f32 %v114, %v197
    %v199 = vpop.f32.mrb[0].mxu0
    %200 = vdwg.mxu0
    %v201 = vlaneseq
    %v202 = vshrl.u32 %v201, 7
    %v203 = vsub.s32 0, %v202
    %v204 = vrot.slane %v117, %v203
    %v205 = vsub.f32 %v24, %v204
    %v206 = vsub.f32 %v25, %v204
    %v207 = vlaneseq
    %v208 = vshrl.u32 %v207, 7
    %v209 = vsub.s32 2, %v208
    %v210 = vrot.slane %v117, %v209
    %v211 = vmul.f32 %v205, %v210
    %v212 = vmul.f32 %v206, %v210
    %v213 = vlaneseq
    %v214 = vshrl.u32 %v213, 7
    %v215 = vsub.s32 1, %v214
    %v216 = vrot.slane %v117, %v215
    %218 = vrot.lane.b32.xlu0 %v216, 8
    %v219 = vpop.permute.xlu0 %218
    %v221 = vsub.f32 %v24, %v219
    %v222 = vsub.f32 %v25, %v219
    %v223 = vlaneseq
    %v224 = vshrl.u32 %v223, 7
    %v225 = vsub.s32 3, %v224
    %v226 = vrot.slane %v117, %v225
    %228 = vrot.lane.b32.xlu0 %v226, 8
    %v229 = vpop.permute.xlu0 %228
    %v231 = vmul.f32 %v221, %v229
    %v232 = vmul.f32 %v222, %v229
    %v233 = vld [vmem:[%s4] sm:$0xff]
    %v234 = vld [vmem:[%s4 + $0x8] sm:$0xff]
    %v235 = vld [vmem:[%s4 + $0x10] sm:$0xff]
    %v236 = vld [vmem:[%s4 + $0x18] sm:$0xff]
    %v237 = vtanh.pop %v193
    %v238 = vtanh.pop %v198
    %vm239 = vcmask 261120
    %v241 = vsel %vm239, %v237, 0
    %v244 = vsel %vm239, %v238, 0
    %246 = vmatprep.subr.mxu0 0.0
    %247 = vmatpush1.msra.mxu0 %v233
    %248 = vmatprep.subr.mxu0 0.0
    %249 = vmatpush1.msra.mxu0 %v234
    %250 = vmatprep.subr.mxu0 0.0
    %251 = vmatpush1.msra.mxu0 %v235
    %252 = vmatprep.subr.mxu0 0.0
    %253 = vmatpush1.msra.mxu0 %v236
    %254 = vmatprep.subr.mxu0 0.0
    %255 = vmatpush1.msra.mxu0 0.0
    %256 = vmatprep.subr.mxu0 0.0
    %257 = vmatpush1.msra.mxu0 0.0
    %258 = vmatprep.subr.mxu0 0.0
    %259 = vmatpush1.msra.mxu0 0.0
    %260 = vmatprep.subr.mxu0 0.0
    %261 = vmatpush1.msra.mxu0 0.0
    %262 = vmatprep.subr.mxu0 0.0
    %263 = vmatpush1.msra.mxu0 0.0
    %264 = vmatprep.subr.mxu0 0.0
    %265 = vmatpush1.msra.mxu0 0.0
    %266 = vmatprep.subr.mxu0 0.0
    %267 = vmatpush1.msra.mxu0 0.0
    %268 = vmatprep.subr.mxu0 0.0
    %269 = vmatpush1.msra.mxu0 0.0
    %270 = vmatprep.subr.mxu0 0.0
    %271 = vmatpush1.msra.mxu0 0.0
    %272 = vmatprep.subr.mxu0 0.0
    %273 = vmatpush1.msra.mxu0 0.0
    %274 = vmatprep.subr.mxu0 0.0
    %275 = vmatpush1.msra.mxu0 0.0
    %276 = vmatprep.subr.mxu0 0.0
    %277 = vmatpush1.msra.mxu0 0.0
    %278 = vmatprep.subr.mxu0 0.0
    %279 = vmatpush1.msra.mxu0 0.0
    %280 = vmatprep.subr.mxu0 0.0
    %281 = vmatpush1.msra.mxu0 0.0
    %282 = vmatprep.subr.mxu0 0.0
    %283 = vmatpush1.msra.mxu0 0.0
    %284 = vmatprep.subr.mxu0 0.0
    %285 = vmatpush1.msra.mxu0 0.0
    %286 = vmatprep.subr.mxu0 0.0
    %287 = vmatpush1.msra.mxu0 0.0
    %288 = vmatprep.subr.mxu0 0.0
    %289 = vmatpush1.msra.mxu0 0.0
    %290 = vmatprep.subr.mxu0 0.0
    %291 = vmatpush1.msra.mxu0 0.0
    %292 = vmatprep.subr.mxu0 0.0
    %293 = vmatpush1.msra.mxu0 0.0
    %294 = vmatprep.subr.mxu0 0.0
    %295 = vmatpush1.msra.mxu0 0.0
    %296 = vmatprep.subr.mxu0 0.0
    %297 = vmatpush1.msra.mxu0 0.0
    %298 = vmatprep.subr.mxu0 0.0
    %299 = vmatpush1.msra.mxu0 0.0
    %300 = vmatprep.subr.mxu0 0.0
    %301 = vmatpush1.msra.mxu0 0.0
    %302 = vmatprep.subr.mxu0 0.0
    %303 = vmatpush1.msra.mxu0 0.0
    %304 = vmatprep.subr.mxu0 0.0
    %305 = vmatpush1.msra.mxu0 0.0
    %306 = vmatprep.subr.mxu0 0.0
    %307 = vmatpush1.msra.mxu0 0.0
    %308 = vmatprep.subr.mxu0 0.0
    %309 = vmatpush1.msra.mxu0 0.0
    %310 = vmatprep.mubr.f32.mxu0 0.0
    %311 = vmatmul.mubr.f32.gmra.mrb[0].mxu0 %v241
    %v312 = vpop.f32.mrb[0].mxu0
    %v313 = vadd.f32 0.0, %v312
    %v314 = vpop.f32.mrb[0].mxu0
    %315 = vmatprep.mubr.f32.mxu0 0.0
    %316 = vmatmul.mubr.f32.gmra.mrb[0].mxu0 %v244
    %v317 = vpop.f32.mrb[0].mxu0
    %v318 = vadd.f32 0.0, %v317
    %v319 = vpop.f32.mrb[0].mxu0
    %320 = vdwg.mxu0
    %v321 = vlaneseq
    %v322 = vshrl.u32 %v321, 7
    %v323 = vsub.s32 6, %v322
    %v324 = vrot.slane %v117, %v323
    %v325 = vadd.f32 %v313, %v324
    %v326 = vadd.f32 %v318, %v324
    %v327 = vtanh.pop %v325
    %v328 = vtanh.pop %v326
    %v329 = vlaneseq
    %v330 = vshrl.u32 %v329, 7
    %v331 = vsub.s32 7, %v330
    %v332 = vrot.slane %v117, %v331
    %334 = vrot.lane.b32.xlu0 %v332, 8
    %v335 = vpop.permute.xlu0 %334
    %v337 = vadd.f32 %v313, %v335
    %v338 = vadd.f32 %v318, %v335
    %v339 = vmul.f32 %v327, 1.442695
    %v340 = vpow.pop %v339
    %v341 = vmul.f32 %v328, 1.442695
    %v342 = vpow.pop %v341
    %345 = vrot.lane.b32.xlu0 %v340, 8
    %v346 = vpop.permute.xlu0 %345
    %347 = vrot.lane.b32.xlu0 %v342, 8
    %v348 = vpop.permute.xlu0 %347
    %v351 = vmul.f32 %v231, %v346
    %v352 = vmul.f32 %v232, %v348
    %v353 = vadd.f32 %v351, %v337
    %v354 = vadd.f32 %v352, %v338
    %s355 = scalar_lea.vmem %s5, 8
    %v356 = vld [vmem:[%s355] sm:$0xff]
    %s357 = scalar_lea.vmem %s3, 8
    %v358 = vld [vmem:[%s357] sm:$0xff]
    %361 = vrot.lane.b32.xlu0 %v353, 120
    %v362 = vpop.permute.xlu0 %361
    %363 = vrot.lane.b32.xlu0 %v354, 120
    %v364 = vpop.permute.xlu0 %363
    %367 = vrot.lane.b32.xlu0 %v109, 96
    %v368 = vpop.permute.xlu0 %367
    %369 = vrot.lane.b32.xlu0 %v114, 96
    %v370 = vpop.permute.xlu0 %369
    %v373 = vsel %vm119, %v362, 0
    %v375 = vsel %vm119, %v364, 0
    %377 = vmatprep.subr.mxu0 0.0
    %378 = vmatpush1.msra.mxu0 %v358
    %379 = vmatprep.subr.mxu0 0.0
    %380 = vmatpush1.msra.mxu0 0.0
    %381 = vmatprep.subr.mxu0 0.0
    %382 = vmatpush1.msra.mxu0 0.0
    %383 = vmatprep.subr.mxu0 0.0
    %384 = vmatpush1.msra.mxu0 0.0
    %385 = vmatprep.subr.mxu0 0.0
    %386 = vmatpush1.msra.mxu0 0.0
    %387 = vmatprep.subr.mxu0 0.0
    %388 = vmatpush1.msra.mxu0 0.0
    %389 = vmatprep.subr.mxu0 0.0
    %390 = vmatpush1.msra.mxu0 0.0
    %391 = vmatprep.subr.mxu0 0.0
    %392 = vmatpush1.msra.mxu0 0.0
    %393 = vmatprep.subr.mxu0 0.0
    %394 = vmatpush1.msra.mxu0 0.0
    %395 = vmatprep.subr.mxu0 0.0
    %396 = vmatpush1.msra.mxu0 0.0
    %397 = vmatprep.subr.mxu0 0.0
    %398 = vmatpush1.msra.mxu0 0.0
    %399 = vmatprep.subr.mxu0 0.0
    %400 = vmatpush1.msra.mxu0 0.0
    %401 = vmatprep.subr.mxu0 0.0
    %402 = vmatpush1.msra.mxu0 0.0
    %403 = vmatprep.subr.mxu0 0.0
    %404 = vmatpush1.msra.mxu0 0.0
    %405 = vmatprep.subr.mxu0 0.0
    %406 = vmatpush1.msra.mxu0 0.0
    %407 = vmatprep.subr.mxu0 0.0
    %408 = vmatpush1.msra.mxu0 0.0
    %409 = vmatprep.subr.mxu0 0.0
    %410 = vmatpush1.msra.mxu0 0.0
    %411 = vmatprep.subr.mxu0 0.0
    %412 = vmatpush1.msra.mxu0 0.0
    %413 = vmatprep.subr.mxu0 0.0
    %414 = vmatpush1.msra.mxu0 0.0
    %415 = vmatprep.subr.mxu0 0.0
    %416 = vmatpush1.msra.mxu0 0.0
    %417 = vmatprep.subr.mxu0 0.0
    %418 = vmatpush1.msra.mxu0 0.0
    %419 = vmatprep.subr.mxu0 0.0
    %420 = vmatpush1.msra.mxu0 0.0
    %421 = vmatprep.subr.mxu0 0.0
    %422 = vmatpush1.msra.mxu0 0.0
    %423 = vmatprep.subr.mxu0 0.0
    %424 = vmatpush1.msra.mxu0 0.0
    %425 = vmatprep.subr.mxu0 0.0
    %426 = vmatpush1.msra.mxu0 0.0
    %427 = vmatprep.subr.mxu0 0.0
    %428 = vmatpush1.msra.mxu0 0.0
    %429 = vmatprep.subr.mxu0 0.0
    %430 = vmatpush1.msra.mxu0 0.0
    %431 = vmatprep.subr.mxu0 0.0
    %432 = vmatpush1.msra.mxu0 0.0
    %433 = vmatprep.subr.mxu0 0.0
    %434 = vmatpush1.msra.mxu0 0.0
    %435 = vmatprep.subr.mxu0 0.0
    %436 = vmatpush1.msra.mxu0 0.0
    %437 = vmatprep.subr.mxu0 0.0
    %438 = vmatpush1.msra.mxu0 0.0
    %439 = vmatprep.subr.mxu0 0.0
    %440 = vmatpush1.msra.mxu0 0.0
    %441 = vmatprep.mubr.f32.mxu0 0.0
    %442 = vmatmul.mubr.f32.gmra.mrb[0].mxu0 %v373
    %v443 = vpop.f32.mrb[0].mxu0
    %v444 = vadd.f32 %v368, %v443
    %v445 = vpop.f32.mrb[0].mxu0
    %446 = vmatprep.mubr.f32.mxu0 0.0
    %447 = vmatmul.mubr.f32.gmra.mrb[0].mxu0 %v375
    %v448 = vpop.f32.mrb[0].mxu0
    %v449 = vadd.f32 %v370, %v448
    %v450 = vpop.f32.mrb[0].mxu0
    %451 = vdwg.mxu0
    %v452 = vlaneseq
    %v453 = vshrl.u32 %v452, 7
    %v454 = vsub.s32 0, %v453
    %v455 = vrot.slane %v356, %v454
    %457 = vrot.lane.b32.xlu0 %v455, 8
    %v458 = vpop.permute.xlu0 %457
    %v460 = vsub.f32 %v353, %v458
    %v461 = vsub.f32 %v354, %v458
    %v462 = vlaneseq
    %v463 = vshrl.u32 %v462, 7
    %v464 = vsub.s32 2, %v463
    %v465 = vrot.slane %v356, %v464
    %467 = vrot.lane.b32.xlu0 %v465, 8
    %v468 = vpop.permute.xlu0 %467
    %v470 = vmul.f32 %v460, %v468
    %v471 = vmul.f32 %v461, %v468
    %v472 = vlaneseq
    %v473 = vshrl.u32 %v472, 7
    %v474 = vsub.s32 1, %v473
    %v475 = vrot.slane %v356, %v474
    %v476 = vsub.f32 %v211, %v475
    %v477 = vsub.f32 %v212, %v475
    %v478 = vlaneseq
    %v479 = vshrl.u32 %v478, 7
    %v480 = vsub.s32 3, %v479
    %v481 = vrot.slane %v356, %v480
    %v482 = vmul.f32 %v476, %v481
    %v483 = vmul.f32 %v477, %v481
    %s484 = scalar_lea.vmem %s4, 32
    %v485 = vld [vmem:[%s484] sm:$0xff]
    %v486 = vld [vmem:[%s484 + $0x8] sm:$0xff]
    %v487 = vld [vmem:[%s484 + $0x10] sm:$0xff]
    %v488 = vld [vmem:[%s484 + $0x18] sm:$0xff]
    %v489 = vtanh.pop %v444
    %v490 = vtanh.pop %v449
    %v492 = vsel %vm239, %v489, 0
    %v495 = vsel %vm239, %v490, 0
    %497 = vmatprep.subr.mxu0 0.0
    %498 = vmatpush1.msra.mxu0 %v485
    %499 = vmatprep.subr.mxu0 0.0
    %500 = vmatpush1.msra.mxu0 %v486
    %501 = vmatprep.subr.mxu0 0.0
    %502 = vmatpush1.msra.mxu0 %v487
    %503 = vmatprep.subr.mxu0 0.0
    %504 = vmatpush1.msra.mxu0 %v488
    %505 = vmatprep.subr.mxu0 0.0
    %506 = vmatpush1.msra.mxu0 0.0
    %507 = vmatprep.subr.mxu0 0.0
    %508 = vmatpush1.msra.mxu0 0.0
    %509 = vmatprep.subr.mxu0 0.0
    %510 = vmatpush1.msra.mxu0 0.0
    %511 = vmatprep.subr.mxu0 0.0
    %512 = vmatpush1.msra.mxu0 0.0
    %513 = vmatprep.subr.mxu0 0.0
    %514 = vmatpush1.msra.mxu0 0.0
    %515 = vmatprep.subr.mxu0 0.0
    %516 = vmatpush1.msra.mxu0 0.0
    %517 = vmatprep.subr.mxu0 0.0
    %518 = vmatpush1.msra.mxu0 0.0
    %519 = vmatprep.subr.mxu0 0.0
    %520 = vmatpush1.msra.mxu0 0.0
    %521 = vmatprep.subr.mxu0 0.0
    %522 = vmatpush1.msra.mxu0 0.0
    %523 = vmatprep.subr.mxu0 0.0
    %524 = vmatpush1.msra.mxu0 0.0
    %525 = vmatprep.subr.mxu0 0.0
    %526 = vmatpush1.msra.mxu0 0.0
    %527 = vmatprep.subr.mxu0 0.0
    %528 = vmatpush1.msra.mxu0 0.0
    %529 = vmatprep.subr.mxu0 0.0
    %530 = vmatpush1.msra.mxu0 0.0
    %531 = vmatprep.subr.mxu0 0.0
    %532 = vmatpush1.msra.mxu0 0.0
    %533 = vmatprep.subr.mxu0 0.0
    %534 = vmatpush1.msra.mxu0 0.0
    %535 = vmatprep.subr.mxu0 0.0
    %536 = vmatpush1.msra.mxu0 0.0
    %537 = vmatprep.subr.mxu0 0.0
    %538 = vmatpush1.msra.mxu0 0.0
    %539 = vmatprep.subr.mxu0 0.0
    %540 = vmatpush1.msra.mxu0 0.0
    %541 = vmatprep.subr.mxu0 0.0
    %542 = vmatpush1.msra.mxu0 0.0
    %543 = vmatprep.subr.mxu0 0.0
    %544 = vmatpush1.msra.mxu0 0.0
    %545 = vmatprep.subr.mxu0 0.0
    %546 = vmatpush1.msra.mxu0 0.0
    %547 = vmatprep.subr.mxu0 0.0
    %548 = vmatpush1.msra.mxu0 0.0
    %549 = vmatprep.subr.mxu0 0.0
    %550 = vmatpush1.msra.mxu0 0.0
    %551 = vmatprep.subr.mxu0 0.0
    %552 = vmatpush1.msra.mxu0 0.0
    %553 = vmatprep.subr.mxu0 0.0
    %554 = vmatpush1.msra.mxu0 0.0
    %555 = vmatprep.subr.mxu0 0.0
    %556 = vmatpush1.msra.mxu0 0.0
    %557 = vmatprep.subr.mxu0 0.0
    %558 = vmatpush1.msra.mxu0 0.0
    %559 = vmatprep.subr.mxu0 0.0
    %560 = vmatpush1.msra.mxu0 0.0
    %561 = vmatprep.mubr.f32.mxu0 0.0
    %562 = vmatmul.mubr.f32.gmra.mrb[0].mxu0 %v492
    %v563 = vpop.f32.mrb[0].mxu0
    %v564 = vadd.f32 0.0, %v563
    %v565 = vpop.f32.mrb[0].mxu0
    %566 = vmatprep.mubr.f32.mxu0 0.0
    %567 = vmatmul.mubr.f32.gmra.mrb[0].mxu0 %v495
    %v568 = vpop.f32.mrb[0].mxu0
    %v569 = vadd.f32 0.0, %v568
    %v570 = vpop.f32.mrb[0].mxu0
    %571 = vdwg.mxu0
    %v572 = vlaneseq
    %v573 = vshrl.u32 %v572, 7
    %v574 = vsub.s32 6, %v573
    %v575 = vrot.slane %v356, %v574
    %v576 = vadd.f32 %v564, %v575
    %v577 = vadd.f32 %v569, %v575
    %v578 = vtanh.pop %v576
    %v579 = vtanh.pop %v577
    %v580 = vlaneseq
    %v581 = vshrl.u32 %v580, 7
    %v582 = vsub.s32 7, %v581
    %v583 = vrot.slane %v356, %v582
    %585 = vrot.lane.b32.xlu0 %v583, 8
    %v586 = vpop.permute.xlu0 %585
    %v588 = vadd.f32 %v564, %v586
    %v589 = vadd.f32 %v569, %v586
    %v590 = vmul.f32 %v578, 1.442695
    %v591 = vpow.pop %v590
    %v592 = vmul.f32 %v579, 1.442695
    %v593 = vpow.pop %v592
    %v594 = vmul.f32 %v482, %v591
    %v595 = vmul.f32 %v483, %v593
    %598 = vrot.lane.b32.xlu0 %v588, 120
    %v599 = vpop.permute.xlu0 %598
    %600 = vrot.lane.b32.xlu0 %v589, 120
    %v601 = vpop.permute.xlu0 %600
    %v604 = vadd.f32 %v594, %v599
    %v605 = vadd.f32 %v595, %v601
    %s606 = scalar_lea.vmem %s5, 16
    %v607 = vld [vmem:[%s606] sm:$0xff]
    %s608 = scalar_lea.vmem %s3, 16
    %v609 = vld [vmem:[%s608] sm:$0xff]
    %610 = vrot.lane.b32.xlu0 %v109, 64
    %v611 = vpop.permute.xlu0 %610
    %612 = vrot.lane.b32.xlu0 %v114, 64
    %v613 = vpop.permute.xlu0 %612
    %v617 = vsel %vm119, %v604, 0
    %v620 = vsel %vm119, %v605, 0
    %622 = vmatprep.subr.mxu0 0.0
    %623 = vmatpush1.msra.mxu0 %v609
    %624 = vmatprep.subr.mxu0 0.0
    %625 = vmatpush1.msra.mxu0 0.0
    %626 = vmatprep.subr.mxu0 0.0
    %627 = vmatpush1.msra.mxu0 0.0
    %628 = vmatprep.subr.mxu0 0.0
    %629 = vmatpush1.msra.mxu0 0.0
    %630 = vmatprep.subr.mxu0 0.0
    %631 = vmatpush1.msra.mxu0 0.0
    %632 = vmatprep.subr.mxu0 0.0
    %633 = vmatpush1.msra.mxu0 0.0
    %634 = vmatprep.subr.mxu0 0.0
    %635 = vmatpush1.msra.mxu0 0.0
    %636 = vmatprep.subr.mxu0 0.0
    %637 = vmatpush1.msra.mxu0 0.0
    %638 = vmatprep.subr.mxu0 0.0
    %639 = vmatpush1.msra.mxu0 0.0
    %640 = vmatprep.subr.mxu0 0.0
    %641 = vmatpush1.msra.mxu0 0.0
    %642 = vmatprep.subr.mxu0 0.0
    %643 = vmatpush1.msra.mxu0 0.0
    %644 = vmatprep.subr.mxu0 0.0
    %645 = vmatpush1.msra.mxu0 0.0
    %646 = vmatprep.subr.mxu0 0.0
    %647 = vmatpush1.msra.mxu0 0.0
    %648 = vmatprep.subr.mxu0 0.0
    %649 = vmatpush1.msra.mxu0 0.0
    %650 = vmatprep.subr.mxu0 0.0
    %651 = vmatpush1.msra.mxu0 0.0
    %652 = vmatprep.subr.mxu0 0.0
    %653 = vmatpush1.msra.mxu0 0.0
    %654 = vmatprep.subr.mxu0 0.0
    %655 = vmatpush1.msra.mxu0 0.0
    %656 = vmatprep.subr.mxu0 0.0
    %657 = vmatpush1.msra.mxu0 0.0
    %658 = vmatprep.subr.mxu0 0.0
    %659 = vmatpush1.msra.mxu0 0.0
    %660 = vmatprep.subr.mxu0 0.0
    %661 = vmatpush1.msra.mxu0 0.0
    %662 = vmatprep.subr.mxu0 0.0
    %663 = vmatpush1.msra.mxu0 0.0
    %664 = vmatprep.subr.mxu0 0.0
    %665 = vmatpush1.msra.mxu0 0.0
    %666 = vmatprep.subr.mxu0 0.0
    %667 = vmatpush1.msra.mxu0 0.0
    %668 = vmatprep.subr.mxu0 0.0
    %669 = vmatpush1.msra.mxu0 0.0
    %670 = vmatprep.subr.mxu0 0.0
    %671 = vmatpush1.msra.mxu0 0.0
    %672 = vmatprep.subr.mxu0 0.0
    %673 = vmatpush1.msra.mxu0 0.0
    %674 = vmatprep.subr.mxu0 0.0
    %675 = vmatpush1.msra.mxu0 0.0
    %676 = vmatprep.subr.mxu0 0.0
    %677 = vmatpush1.msra.mxu0 0.0
    %678 = vmatprep.subr.mxu0 0.0
    %679 = vmatpush1.msra.mxu0 0.0
    %680 = vmatprep.subr.mxu0 0.0
    %681 = vmatpush1.msra.mxu0 0.0
    %682 = vmatprep.subr.mxu0 0.0
    %683 = vmatpush1.msra.mxu0 0.0
    %684 = vmatprep.subr.mxu0 0.0
    %685 = vmatpush1.msra.mxu0 0.0
    %686 = vmatprep.mubr.f32.mxu0 0.0
    %687 = vmatmul.mubr.f32.gmra.mrb[0].mxu0 %v617
    %v688 = vpop.f32.mrb[0].mxu0
    %v689 = vadd.f32 %v611, %v688
    %v690 = vpop.f32.mrb[0].mxu0
    %691 = vmatprep.mubr.f32.mxu0 0.0
    %692 = vmatmul.mubr.f32.gmra.mrb[0].mxu0 %v620
    %v693 = vpop.f32.mrb[0].mxu0
    %v694 = vadd.f32 %v613, %v693
    %v695 = vpop.f32.mrb[0].mxu0
    %696 = vdwg.mxu0
    %v697 = vlaneseq
    %v698 = vshrl.u32 %v697, 7
    %v699 = vsub.s32 0, %v698
    %v700 = vrot.slane %v607, %v699
    %v701 = vsub.f32 %v604, %v700
    %v702 = vsub.f32 %v605, %v700
    %v703 = vlaneseq
    %v704 = vshrl.u32 %v703, 7
    %v705 = vsub.s32 2, %v704
    %v706 = vrot.slane %v607, %v705
    %v707 = vmul.f32 %v701, %v706
    %v708 = vmul.f32 %v702, %v706
    %v709 = vlaneseq
    %v710 = vshrl.u32 %v709, 7
    %v711 = vsub.s32 1, %v710
    %v712 = vrot.slane %v607, %v711
    %714 = vrot.lane.b32.xlu0 %v712, 8
    %v715 = vpop.permute.xlu0 %714
    %v717 = vsub.f32 %v470, %v715
    %v718 = vsub.f32 %v471, %v715
    %v719 = vlaneseq
    %v720 = vshrl.u32 %v719, 7
    %v721 = vsub.s32 3, %v720
    %v722 = vrot.slane %v607, %v721
    %724 = vrot.lane.b32.xlu0 %v722, 8
    %v725 = vpop.permute.xlu0 %724
    %v727 = vmul.f32 %v717, %v725
    %v728 = vmul.f32 %v718, %v725
    %s729 = scalar_lea.vmem %s4, 64
    %v730 = vld [vmem:[%s729] sm:$0xff]
    %v731 = vld [vmem:[%s729 + $0x8] sm:$0xff]
    %v732 = vld [vmem:[%s729 + $0x10] sm:$0xff]
    %v733 = vld [vmem:[%s729 + $0x18] sm:$0xff]
    %v734 = vtanh.pop %v689
    %v735 = vtanh.pop %v694
    %v737 = vsel %vm239, %v734, 0
    %v740 = vsel %vm239, %v735, 0
    %742 = vmatprep.subr.mxu0 0.0
    %743 = vmatpush1.msra.mxu0 %v730
    %744 = vmatprep.subr.mxu0 0.0
    %745 = vmatpush1.msra.mxu0 %v731
    %746 = vmatprep.subr.mxu0 0.0
    %747 = vmatpush1.msra.mxu0 %v732
    %748 = vmatprep.subr.mxu0 0.0
    %749 = vmatpush1.msra.mxu0 %v733
    %750 = vmatprep.subr.mxu0 0.0
    %751 = vmatpush1.msra.mxu0 0.0
    %752 = vmatprep.subr.mxu0 0.0
    %753 = vmatpush1.msra.mxu0 0.0
    %754 = vmatprep.subr.mxu0 0.0
    %755 = vmatpush1.msra.mxu0 0.0
    %756 = vmatprep.subr.mxu0 0.0
    %757 = vmatpush1.msra.mxu0 0.0
    %758 = vmatprep.subr.mxu0 0.0
    %759 = vmatpush1.msra.mxu0 0.0
    %760 = vmatprep.subr.mxu0 0.0
    %761 = vmatpush1.msra.mxu0 0.0
    %762 = vmatprep.subr.mxu0 0.0
    %763 = vmatpush1.msra.mxu0 0.0
    %764 = vmatprep.subr.mxu0 0.0
    %765 = vmatpush1.msra.mxu0 0.0
    %766 = vmatprep.subr.mxu0 0.0
    %767 = vmatpush1.msra.mxu0 0.0
    %768 = vmatprep.subr.mxu0 0.0
    %769 = vmatpush1.msra.mxu0 0.0
    %770 = vmatprep.subr.mxu0 0.0
    %771 = vmatpush1.msra.mxu0 0.0
    %772 = vmatprep.subr.mxu0 0.0
    %773 = vmatpush1.msra.mxu0 0.0
    %774 = vmatprep.subr.mxu0 0.0
    %775 = vmatpush1.msra.mxu0 0.0
    %776 = vmatprep.subr.mxu0 0.0
    %777 = vmatpush1.msra.mxu0 0.0
    %778 = vmatprep.subr.mxu0 0.0
    %779 = vmatpush1.msra.mxu0 0.0
    %780 = vmatprep.subr.mxu0 0.0
    %781 = vmatpush1.msra.mxu0 0.0
    %782 = vmatprep.subr.mxu0 0.0
    %783 = vmatpush1.msra.mxu0 0.0
    %784 = vmatprep.subr.mxu0 0.0
    %785 = vmatpush1.msra.mxu0 0.0
    %786 = vmatprep.subr.mxu0 0.0
    %787 = vmatpush1.msra.mxu0 0.0
    %788 = vmatprep.subr.mxu0 0.0
    %789 = vmatpush1.msra.mxu0 0.0
    %790 = vmatprep.subr.mxu0 0.0
    %791 = vmatpush1.msra.mxu0 0.0
    %792 = vmatprep.subr.mxu0 0.0
    %793 = vmatpush1.msra.mxu0 0.0
    %794 = vmatprep.subr.mxu0 0.0
    %795 = vmatpush1.msra.mxu0 0.0
    %796 = vmatprep.subr.mxu0 0.0
    %797 = vmatpush1.msra.mxu0 0.0
    %798 = vmatprep.subr.mxu0 0.0
    %799 = vmatpush1.msra.mxu0 0.0
    %800 = vmatprep.subr.mxu0 0.0
    %801 = vmatpush1.msra.mxu0 0.0
    %802 = vmatprep.subr.mxu0 0.0
    %803 = vmatpush1.msra.mxu0 0.0
    %804 = vmatprep.subr.mxu0 0.0
    %805 = vmatpush1.msra.mxu0 0.0
    %806 = vmatprep.mubr.f32.mxu0 0.0
    %807 = vmatmul.mubr.f32.gmra.mrb[0].mxu0 %v737
    %v808 = vpop.f32.mrb[0].mxu0
    %v809 = vadd.f32 0.0, %v808
    %v810 = vpop.f32.mrb[0].mxu0
    %811 = vmatprep.mubr.f32.mxu0 0.0
    %812 = vmatmul.mubr.f32.gmra.mrb[0].mxu0 %v740
    %v813 = vpop.f32.mrb[0].mxu0
    %v814 = vadd.f32 0.0, %v813
    %v815 = vpop.f32.mrb[0].mxu0
    %816 = vdwg.mxu0
    %v817 = vlaneseq
    %v818 = vshrl.u32 %v817, 7
    %v819 = vsub.s32 6, %v818
    %v820 = vrot.slane %v607, %v819
    %v821 = vadd.f32 %v809, %v820
    %v822 = vadd.f32 %v814, %v820
    %v823 = vtanh.pop %v821
    %v824 = vtanh.pop %v822
    %v825 = vlaneseq
    %v826 = vshrl.u32 %v825, 7
    %v827 = vsub.s32 7, %v826
    %v828 = vrot.slane %v607, %v827
    %830 = vrot.lane.b32.xlu0 %v828, 8
    %v831 = vpop.permute.xlu0 %830
    %v833 = vadd.f32 %v809, %v831
    %v834 = vadd.f32 %v814, %v831
    %v835 = vmul.f32 %v823, 1.442695
    %v836 = vpow.pop %v835
    %v837 = vmul.f32 %v824, 1.442695
    %v838 = vpow.pop %v837
    %841 = vrot.lane.b32.xlu0 %v836, 8
    %v842 = vpop.permute.xlu0 %841
    %843 = vrot.lane.b32.xlu0 %v838, 8
    %v844 = vpop.permute.xlu0 %843
    %v847 = vmul.f32 %v727, %v842
    %v848 = vmul.f32 %v728, %v844
    %v849 = vadd.f32 %v847, %v833
    %v850 = vadd.f32 %v848, %v834
    %s851 = scalar_lea.vmem %s5, 24
    %v852 = vld [vmem:[%s851] sm:$0xff]
    %s853 = scalar_lea.vmem %s3, 24
    %v854 = vld [vmem:[%s853] sm:$0xff]
    %857 = vrot.lane.b32.xlu0 %v849, 120
    %v858 = vpop.permute.xlu0 %857
    %859 = vrot.lane.b32.xlu0 %v850, 120
    %v860 = vpop.permute.xlu0 %859
    %861 = vrot.lane.b32.xlu0 %v109, 32
    %v862 = vpop.permute.xlu0 %861
    %863 = vrot.lane.b32.xlu0 %v114, 32
    %v864 = vpop.permute.xlu0 %863
    %v867 = vsel %vm119, %v858, 0
    %v869 = vsel %vm119, %v860, 0
    %871 = vmatprep.subr.mxu0 0.0
    %872 = vmatpush1.msra.mxu0 %v854
    %873 = vmatprep.subr.mxu0 0.0
    %874 = vmatpush1.msra.mxu0 0.0
    %875 = vmatprep.subr.mxu0 0.0
    %876 = vmatpush1.msra.mxu0 0.0
    %877 = vmatprep.subr.mxu0 0.0
    %878 = vmatpush1.msra.mxu0 0.0
    %879 = vmatprep.subr.mxu0 0.0
    %880 = vmatpush1.msra.mxu0 0.0
    %881 = vmatprep.subr.mxu0 0.0
    %882 = vmatpush1.msra.mxu0 0.0
    %883 = vmatprep.subr.mxu0 0.0
    %884 = vmatpush1.msra.mxu0 0.0
    %885 = vmatprep.subr.mxu0 0.0
    %886 = vmatpush1.msra.mxu0 0.0
    %887 = vmatprep.subr.mxu0 0.0
    %888 = vmatpush1.msra.mxu0 0.0
    %889 = vmatprep.subr.mxu0 0.0
    %890 = vmatpush1.msra.mxu0 0.0
    %891 = vmatprep.subr.mxu0 0.0
    %892 = vmatpush1.msra.mxu0 0.0
    %893 = vmatprep.subr.mxu0 0.0
    %894 = vmatpush1.msra.mxu0 0.0
    %895 = vmatprep.subr.mxu0 0.0
    %896 = vmatpush1.msra.mxu0 0.0
    %897 = vmatprep.subr.mxu0 0.0
    %898 = vmatpush1.msra.mxu0 0.0
    %899 = vmatprep.subr.mxu0 0.0
    %900 = vmatpush1.msra.mxu0 0.0
    %901 = vmatprep.subr.mxu0 0.0
    %902 = vmatpush1.msra.mxu0 0.0
    %903 = vmatprep.subr.mxu0 0.0
    %904 = vmatpush1.msra.mxu0 0.0
    %905 = vmatprep.subr.mxu0 0.0
    %906 = vmatpush1.msra.mxu0 0.0
    %907 = vmatprep.subr.mxu0 0.0
    %908 = vmatpush1.msra.mxu0 0.0
    %909 = vmatprep.subr.mxu0 0.0
    %910 = vmatpush1.msra.mxu0 0.0
    %911 = vmatprep.subr.mxu0 0.0
    %912 = vmatpush1.msra.mxu0 0.0
    %913 = vmatprep.subr.mxu0 0.0
    %914 = vmatpush1.msra.mxu0 0.0
    %915 = vmatprep.subr.mxu0 0.0
    %916 = vmatpush1.msra.mxu0 0.0
    %917 = vmatprep.subr.mxu0 0.0
    %918 = vmatpush1.msra.mxu0 0.0
    %919 = vmatprep.subr.mxu0 0.0
    %920 = vmatpush1.msra.mxu0 0.0
    %921 = vmatprep.subr.mxu0 0.0
    %922 = vmatpush1.msra.mxu0 0.0
    %923 = vmatprep.subr.mxu0 0.0
    %924 = vmatpush1.msra.mxu0 0.0
    %925 = vmatprep.subr.mxu0 0.0
    %926 = vmatpush1.msra.mxu0 0.0
    %927 = vmatprep.subr.mxu0 0.0
    %928 = vmatpush1.msra.mxu0 0.0
    %929 = vmatprep.subr.mxu0 0.0
    %930 = vmatpush1.msra.mxu0 0.0
    %931 = vmatprep.subr.mxu0 0.0
    %932 = vmatpush1.msra.mxu0 0.0
    %933 = vmatprep.subr.mxu0 0.0
    %934 = vmatpush1.msra.mxu0 0.0
    %935 = vmatprep.mubr.f32.mxu0 0.0
    %936 = vmatmul.mubr.f32.gmra.mrb[0].mxu0 %v867
    %v937 = vpop.f32.mrb[0].mxu0
    %v938 = vadd.f32 %v862, %v937
    %v939 = vpop.f32.mrb[0].mxu0
    %940 = vmatprep.mubr.f32.mxu0 0.0
    %941 = vmatmul.mubr.f32.gmra.mrb[0].mxu0 %v869
    %v942 = vpop.f32.mrb[0].mxu0
    %v943 = vadd.f32 %v864, %v942
    %v944 = vpop.f32.mrb[0].mxu0
    %945 = vdwg.mxu0
    %v946 = vlaneseq
    %v947 = vshrl.u32 %v946, 7
    %v948 = vsub.s32 0, %v947
    %v949 = vrot.slane %v852, %v948
    %951 = vrot.lane.b32.xlu0 %v949, 8
    %v952 = vpop.permute.xlu0 %951
    %v954 = vsub.f32 %v849, %v952
    %v955 = vsub.f32 %v850, %v952
    %v956 = vlaneseq
    %v957 = vshrl.u32 %v956, 7
    %v958 = vsub.s32 2, %v957
    %v959 = vrot.slane %v852, %v958
    %961 = vrot.lane.b32.xlu0 %v959, 8
    %v962 = vpop.permute.xlu0 %961
    %v964 = vmul.f32 %v954, %v962
    %v965 = vmul.f32 %v955, %v962
    %v966 = vlaneseq
    %v967 = vshrl.u32 %v966, 7
    %v968 = vsub.s32 1, %v967
    %v969 = vrot.slane %v852, %v968
    %v970 = vsub.f32 %v707, %v969
    %v971 = vsub.f32 %v708, %v969
    %v972 = vlaneseq
    %v973 = vshrl.u32 %v972, 7
    %v974 = vsub.s32 3, %v973
    %v975 = vrot.slane %v852, %v974
    %v976 = vmul.f32 %v970, %v975
    %v977 = vmul.f32 %v971, %v975
    %s978 = scalar_lea.vmem %s4, 96
    %v979 = vld [vmem:[%s978] sm:$0xff]
    %v980 = vld [vmem:[%s978 + $0x8] sm:$0xff]
    %v981 = vld [vmem:[%s978 + $0x10] sm:$0xff]
    %v982 = vld [vmem:[%s978 + $0x18] sm:$0xff]
    %v983 = vtanh.pop %v938
    %v984 = vtanh.pop %v943
    %v986 = vsel %vm239, %v983, 0
    %v989 = vsel %vm239, %v984, 0
    %991 = vmatprep.subr.mxu0 0.0
    %992 = vmatpush1.msra.mxu0 %v979
    %993 = vmatprep.subr.mxu0 0.0
    %994 = vmatpush1.msra.mxu0 %v980
    %995 = vmatprep.subr.mxu0 0.0
    %996 = vmatpush1.msra.mxu0 %v981
    %997 = vmatprep.subr.mxu0 0.0
    %998 = vmatpush1.msra.mxu0 %v982
    %999 = vmatprep.subr.mxu0 0.0
    %1000 = vmatpush1.msra.mxu0 0.0
    %1001 = vmatprep.subr.mxu0 0.0
    %1002 = vmatpush1.msra.mxu0 0.0
    %1003 = vmatprep.subr.mxu0 0.0
    %1004 = vmatpush1.msra.mxu0 0.0
    %1005 = vmatprep.subr.mxu0 0.0
    %1006 = vmatpush1.msra.mxu0 0.0
    %1007 = vmatprep.subr.mxu0 0.0
    %1008 = vmatpush1.msra.mxu0 0.0
    %1009 = vmatprep.subr.mxu0 0.0
    %1010 = vmatpush1.msra.mxu0 0.0
    %1011 = vmatprep.subr.mxu0 0.0
    %1012 = vmatpush1.msra.mxu0 0.0
    %1013 = vmatprep.subr.mxu0 0.0
    %1014 = vmatpush1.msra.mxu0 0.0
    %1015 = vmatprep.subr.mxu0 0.0
    %1016 = vmatpush1.msra.mxu0 0.0
    %1017 = vmatprep.subr.mxu0 0.0
    %1018 = vmatpush1.msra.mxu0 0.0
    %1019 = vmatprep.subr.mxu0 0.0
    %1020 = vmatpush1.msra.mxu0 0.0
    %1021 = vmatprep.subr.mxu0 0.0
    %1022 = vmatpush1.msra.mxu0 0.0
    %1023 = vmatprep.subr.mxu0 0.0
    %1024 = vmatpush1.msra.mxu0 0.0
    %1025 = vmatprep.subr.mxu0 0.0
    %1026 = vmatpush1.msra.mxu0 0.0
    %1027 = vmatprep.subr.mxu0 0.0
    %1028 = vmatpush1.msra.mxu0 0.0
    %1029 = vmatprep.subr.mxu0 0.0
    %1030 = vmatpush1.msra.mxu0 0.0
    %1031 = vmatprep.subr.mxu0 0.0
    %1032 = vmatpush1.msra.mxu0 0.0
    %1033 = vmatprep.subr.mxu0 0.0
    %1034 = vmatpush1.msra.mxu0 0.0
    %1035 = vmatprep.subr.mxu0 0.0
    %1036 = vmatpush1.msra.mxu0 0.0
    %1037 = vmatprep.subr.mxu0 0.0
    %1038 = vmatpush1.msra.mxu0 0.0
    %1039 = vmatprep.subr.mxu0 0.0
    %1040 = vmatpush1.msra.mxu0 0.0
    %1041 = vmatprep.subr.mxu0 0.0
    %1042 = vmatpush1.msra.mxu0 0.0
    %1043 = vmatprep.subr.mxu0 0.0
    %1044 = vmatpush1.msra.mxu0 0.0
    %1045 = vmatprep.subr.mxu0 0.0
    %1046 = vmatpush1.msra.mxu0 0.0
    %1047 = vmatprep.subr.mxu0 0.0
    %1048 = vmatpush1.msra.mxu0 0.0
    %1049 = vmatprep.subr.mxu0 0.0
    %1050 = vmatpush1.msra.mxu0 0.0
    %1051 = vmatprep.subr.mxu0 0.0
    %1052 = vmatpush1.msra.mxu0 0.0
    %1053 = vmatprep.subr.mxu0 0.0
    %1054 = vmatpush1.msra.mxu0 0.0
    %1055 = vmatprep.mubr.f32.mxu0 0.0
    %1056 = vmatmul.mubr.f32.gmra.mrb[0].mxu0 %v986
    %v1057 = vpop.f32.mrb[0].mxu0
    %v1058 = vadd.f32 0.0, %v1057
    %v1059 = vpop.f32.mrb[0].mxu0
    %1060 = vmatprep.mubr.f32.mxu0 0.0
    %1061 = vmatmul.mubr.f32.gmra.mrb[0].mxu0 %v989
    %v1062 = vpop.f32.mrb[0].mxu0
    %v1063 = vadd.f32 0.0, %v1062
    %v1064 = vpop.f32.mrb[0].mxu0
    %1065 = vdwg.mxu0
    %v1066 = vlaneseq
    %v1067 = vshrl.u32 %v1066, 7
    %v1068 = vsub.s32 6, %v1067
    %v1069 = vrot.slane %v852, %v1068
    %v1070 = vadd.f32 %v1058, %v1069
    %v1071 = vadd.f32 %v1063, %v1069
    %v1072 = vtanh.pop %v1070
    %v1073 = vtanh.pop %v1071
    %v1074 = vlaneseq
    %v1075 = vshrl.u32 %v1074, 7
    %v1076 = vsub.s32 7, %v1075
    %v1077 = vrot.slane %v852, %v1076
    %1079 = vrot.lane.b32.xlu0 %v1077, 8
    %v1080 = vpop.permute.xlu0 %1079
    %v1082 = vadd.f32 %v1058, %v1080
    %v1083 = vadd.f32 %v1063, %v1080
    %v1084 = vmul.f32 %v1072, 1.442695
    %v1085 = vpow.pop %v1084
    %v1086 = vmul.f32 %v1073, 1.442695
    %v1087 = vpow.pop %v1086
    %v1088 = vmul.f32 %v976, %v1085
    %v1089 = vmul.f32 %v977, %v1087
    %1092 = vrot.lane.b32.xlu0 %v1082, 120
    %v1093 = vpop.permute.xlu0 %1092
    %1094 = vrot.lane.b32.xlu0 %v1083, 120
    %v1095 = vpop.permute.xlu0 %1094
    %v1098 = vadd.f32 %v1088, %v1093
    %v1099 = vadd.f32 %v1089, %v1095
    %s1100 = scalar_lea.vmem %s3, 56
    %v1101 = vld [vmem:[%s1100] sm:$0xff]
    %v1102 = vlaneseq
    %v1103 = vshrl.u32 %v1102, 7
    %v1104 = vsub.s32 1, %v1103
    %v1105 = vrot.slane %v30, %v1104
    %1108 = vrot.lane.b32.xlu0 %v964, 120
    %v1109 = vpop.permute.xlu0 %1108
    %1110 = vrot.lane.b32.xlu0 %v965, 120
    %v1111 = vpop.permute.xlu0 %1110
    %1113 = vrot.lane.b32.xlu0 %v1105, 32
    %v1114 = vpop.permute.xlu0 %1113
    %v1116 = vsel %vm119, %v1109, 0
    %v1118 = vsel %vm119, %v1111, 0
    %1120 = vmatprep.subr.mxu0 0.0
    %1121 = vmatpush1.msra.mxu0 %v1101
    %1122 = vmatprep.subr.mxu0 0.0
    %1123 = vmatpush1.msra.mxu0 0.0
    %1124 = vmatprep.subr.mxu0 0.0
    %1125 = vmatpush1.msra.mxu0 0.0
    %1126 = vmatprep.subr.mxu0 0.0
    %1127 = vmatpush1.msra.mxu0 0.0
    %1128 = vmatprep.subr.mxu0 0.0
    %1129 = vmatpush1.msra.mxu0 0.0
    %1130 = vmatprep.subr.mxu0 0.0
    %1131 = vmatpush1.msra.mxu0 0.0
    %1132 = vmatprep.subr.mxu0 0.0
    %1133 = vmatpush1.msra.mxu0 0.0
    %1134 = vmatprep.subr.mxu0 0.0
    %1135 = vmatpush1.msra.mxu0 0.0
    %1136 = vmatprep.subr.mxu0 0.0
    %1137 = vmatpush1.msra.mxu0 0.0
    %1138 = vmatprep.subr.mxu0 0.0
    %1139 = vmatpush1.msra.mxu0 0.0
    %1140 = vmatprep.subr.mxu0 0.0
    %1141 = vmatpush1.msra.mxu0 0.0
    %1142 = vmatprep.subr.mxu0 0.0
    %1143 = vmatpush1.msra.mxu0 0.0
    %1144 = vmatprep.subr.mxu0 0.0
    %1145 = vmatpush1.msra.mxu0 0.0
    %1146 = vmatprep.subr.mxu0 0.0
    %1147 = vmatpush1.msra.mxu0 0.0
    %1148 = vmatprep.subr.mxu0 0.0
    %1149 = vmatpush1.msra.mxu0 0.0
    %1150 = vmatprep.subr.mxu0 0.0
    %1151 = vmatpush1.msra.mxu0 0.0
    %1152 = vmatprep.subr.mxu0 0.0
    %1153 = vmatpush1.msra.mxu0 0.0
    %1154 = vmatprep.subr.mxu0 0.0
    %1155 = vmatpush1.msra.mxu0 0.0
    %1156 = vmatprep.subr.mxu0 0.0
    %1157 = vmatpush1.msra.mxu0 0.0
    %1158 = vmatprep.subr.mxu0 0.0
    %1159 = vmatpush1.msra.mxu0 0.0
    %1160 = vmatprep.subr.mxu0 0.0
    %1161 = vmatpush1.msra.mxu0 0.0
    %1162 = vmatprep.subr.mxu0 0.0
    %1163 = vmatpush1.msra.mxu0 0.0
    %1164 = vmatprep.subr.mxu0 0.0
    %1165 = vmatpush1.msra.mxu0 0.0
    %1166 = vmatprep.subr.mxu0 0.0
    %1167 = vmatpush1.msra.mxu0 0.0
    %1168 = vmatprep.subr.mxu0 0.0
    %1169 = vmatpush1.msra.mxu0 0.0
    %1170 = vmatprep.subr.mxu0 0.0
    %1171 = vmatpush1.msra.mxu0 0.0
    %1172 = vmatprep.subr.mxu0 0.0
    %1173 = vmatpush1.msra.mxu0 0.0
    %1174 = vmatprep.subr.mxu0 0.0
    %1175 = vmatpush1.msra.mxu0 0.0
    %1176 = vmatprep.subr.mxu0 0.0
    %1177 = vmatpush1.msra.mxu0 0.0
    %1178 = vmatprep.subr.mxu0 0.0
    %1179 = vmatpush1.msra.mxu0 0.0
    %1180 = vmatprep.subr.mxu0 0.0
    %1181 = vmatpush1.msra.mxu0 0.0
    %1182 = vmatprep.subr.mxu0 0.0
    %1183 = vmatpush1.msra.mxu0 0.0
    %1184 = vmatprep.mubr.f32.mxu0 0.0
    %1185 = vmatmul.mubr.f32.gmra.mrb[0].mxu0 %v1116
    %v1186 = vpop.f32.mrb[0].mxu0
    %v1187 = vadd.f32 %v1114, %v1186
    %v1188 = vpop.f32.mrb[0].mxu0
    %1189 = vmatprep.mubr.f32.mxu0 0.0
    %1190 = vmatmul.mubr.f32.gmra.mrb[0].mxu0 %v1118
    %v1191 = vpop.f32.mrb[0].mxu0
    %v1192 = vadd.f32 %v1114, %v1191
    %v1193 = vpop.f32.mrb[0].mxu0
    %1194 = vdwg.mxu0
    %v1195 = vtanh.pop %v1187
    %v1196 = vtanh.pop %v1192
    %v1198 = vsel %vm239, %v1195, 0
    %v1201 = vsel %vm239, %v1196, 0
    %1203 = vmatprep.subr.mxu0 0.0
    %1204 = vmatpush1.msra.mxu0 %v979
    %1205 = vmatprep.subr.mxu0 0.0
    %1206 = vmatpush1.msra.mxu0 %v980
    %1207 = vmatprep.subr.mxu0 0.0
    %1208 = vmatpush1.msra.mxu0 %v981
    %1209 = vmatprep.subr.mxu0 0.0
    %1210 = vmatpush1.msra.mxu0 %v982
    %1211 = vmatprep.subr.mxu0 0.0
    %1212 = vmatpush1.msra.mxu0 0.0
    %1213 = vmatprep.subr.mxu0 0.0
    %1214 = vmatpush1.msra.mxu0 0.0
    %1215 = vmatprep.subr.mxu0 0.0
    %1216 = vmatpush1.msra.mxu0 0.0
    %1217 = vmatprep.subr.mxu0 0.0
    %1218 = vmatpush1.msra.mxu0 0.0
    %1219 = vmatprep.subr.mxu0 0.0
    %1220 = vmatpush1.msra.mxu0 0.0
    %1221 = vmatprep.subr.mxu0 0.0
    %1222 = vmatpush1.msra.mxu0 0.0
    %1223 = vmatprep.subr.mxu0 0.0
    %1224 = vmatpush1.msra.mxu0 0.0
    %1225 = vmatprep.subr.mxu0 0.0
    %1226 = vmatpush1.msra.mxu0 0.0
    %1227 = vmatprep.subr.mxu0 0.0
    %1228 = vmatpush1.msra.mxu0 0.0
    %1229 = vmatprep.subr.mxu0 0.0
    %1230 = vmatpush1.msra.mxu0 0.0
    %1231 = vmatprep.subr.mxu0 0.0
    %1232 = vmatpush1.msra.mxu0 0.0
    %1233 = vmatprep.subr.mxu0 0.0
    %1234 = vmatpush1.msra.mxu0 0.0
    %1235 = vmatprep.subr.mxu0 0.0
    %1236 = vmatpush1.msra.mxu0 0.0
    %1237 = vmatprep.subr.mxu0 0.0
    %1238 = vmatpush1.msra.mxu0 0.0
    %1239 = vmatprep.subr.mxu0 0.0
    %1240 = vmatpush1.msra.mxu0 0.0
    %1241 = vmatprep.subr.mxu0 0.0
    %1242 = vmatpush1.msra.mxu0 0.0
    %1243 = vmatprep.subr.mxu0 0.0
    %1244 = vmatpush1.msra.mxu0 0.0
    %1245 = vmatprep.subr.mxu0 0.0
    %1246 = vmatpush1.msra.mxu0 0.0
    %1247 = vmatprep.subr.mxu0 0.0
    %1248 = vmatpush1.msra.mxu0 0.0
    %1249 = vmatprep.subr.mxu0 0.0
    %1250 = vmatpush1.msra.mxu0 0.0
    %1251 = vmatprep.subr.mxu0 0.0
    %1252 = vmatpush1.msra.mxu0 0.0
    %1253 = vmatprep.subr.mxu0 0.0
    %1254 = vmatpush1.msra.mxu0 0.0
    %1255 = vmatprep.subr.mxu0 0.0
    %1256 = vmatpush1.msra.mxu0 0.0
    %1257 = vmatprep.subr.mxu0 0.0
    %1258 = vmatpush1.msra.mxu0 0.0
    %1259 = vmatprep.subr.mxu0 0.0
    %1260 = vmatpush1.msra.mxu0 0.0
    %1261 = vmatprep.subr.mxu0 0.0
    %1262 = vmatpush1.msra.mxu0 0.0
    %1263 = vmatprep.subr.mxu0 0.0
    %1264 = vmatpush1.msra.mxu0 0.0
    %1265 = vmatprep.subr.mxu0 0.0
    %1266 = vmatpush1.msra.mxu0 0.0
    %1267 = vmatprep.mubr.f32.mxu0 0.0
    %1268 = vmatmul.mubr.f32.gmra.mrb[0].mxu0 %v1198
    %v1269 = vpop.f32.mrb[0].mxu0
    %v1270 = vadd.f32 0.0, %v1269
    %v1271 = vpop.f32.mrb[0].mxu0
    %1272 = vmatprep.mubr.f32.mxu0 0.0
    %1273 = vmatmul.mubr.f32.gmra.mrb[0].mxu0 %v1201
    %v1274 = vpop.f32.mrb[0].mxu0
    %v1275 = vadd.f32 0.0, %v1274
    %v1276 = vpop.f32.mrb[0].mxu0
    %1277 = vdwg.mxu0
    %v1278 = vadd.f32 %v1270, %v1069
    %v1279 = vadd.f32 %v1275, %v1069
    %v1280 = vtanh.pop %v1278
    %v1281 = vtanh.pop %v1279
    %v1282 = vadd.f32 %v1270, %v1080
    %v1283 = vadd.f32 %v1275, %v1080
    %1286 = vrot.lane.b32.xlu0 %v1282, 120
    %v1287 = vpop.permute.xlu0 %1286
    %1288 = vrot.lane.b32.xlu0 %v1283, 120
    %v1289 = vpop.permute.xlu0 %1288
    %v1292 = vsub.f32 %v1098, %v1287
    %v1293 = vsub.f32 %v1099, %v1289
    %v1294 = vsub.f32 0.0, %v1280
    %v1295 = vsub.f32 0.0, %v1281
    %v1296 = vmul.f32 %v1294, 1.442695
    %v1297 = vpow.pop %v1296
    %v1298 = vmul.f32 %v1295, 1.442695
    %v1299 = vpow.pop %v1298
    %v1300 = vmul.f32 %v1292, %v1297
    %v1301 = vmul.f32 %v1293, %v1299
    %v1302 = vlaneseq
    %v1303 = vshrl.u32 %v1302, 7
    %v1304 = vsub.s32 4, %v1303
    %v1305 = vrot.slane %v852, %v1304
    %1307 = vrot.lane.b32.xlu0 %v1305, 8
    %v1308 = vpop.permute.xlu0 %1307
    %v1310 = vmul.f32 %v964, %v1308
    %v1311 = vmul.f32 %v965, %v1308
    %v1312 = vadd.f32 %v1310, %v952
    %v1313 = vadd.f32 %v1311, %v952
    %v1314 = vlaneseq
    %v1315 = vshrl.u32 %v1314, 7
    %v1316 = vsub.s32 5, %v1315
    %v1317 = vrot.slane %v852, %v1316
    %v1318 = vmul.f32 %v1300, %v1317
    %v1319 = vmul.f32 %v1301, %v1317
    %v1320 = vadd.f32 %v1318, %v969
    %v1321 = vadd.f32 %v1319, %v969
    %s1322 = scalar_lea.vmem %s3, 48
    %v1323 = vld [vmem:[%s1322] sm:$0xff]
    %1324 = vrot.lane.b32.xlu0 %v1105, 64
    %v1325 = vpop.permute.xlu0 %1324
    %v1328 = vsel %vm119, %v1320, 0
    %v1331 = vsel %vm119, %v1321, 0
    %1333 = vmatprep.subr.mxu0 0.0
    %1334 = vmatpush1.msra.mxu0 %v1323
    %1335 = vmatprep.subr.mxu0 0.0
    %1336 = vmatpush1.msra.mxu0 0.0
    %1337 = vmatprep.subr.mxu0 0.0
    %1338 = vmatpush1.msra.mxu0 0.0
    %1339 = vmatprep.subr.mxu0 0.0
    %1340 = vmatpush1.msra.mxu0 0.0
    %1341 = vmatprep.subr.mxu0 0.0
    %1342 = vmatpush1.msra.mxu0 0.0
    %1343 = vmatprep.subr.mxu0 0.0
    %1344 = vmatpush1.msra.mxu0 0.0
    %1345 = vmatprep.subr.mxu0 0.0
    %1346 = vmatpush1.msra.mxu0 0.0
    %1347 = vmatprep.subr.mxu0 0.0
    %1348 = vmatpush1.msra.mxu0 0.0
    %1349 = vmatprep.subr.mxu0 0.0
    %1350 = vmatpush1.msra.mxu0 0.0
    %1351 = vmatprep.subr.mxu0 0.0
    %1352 = vmatpush1.msra.mxu0 0.0
    %1353 = vmatprep.subr.mxu0 0.0
    %1354 = vmatpush1.msra.mxu0 0.0
    %1355 = vmatprep.subr.mxu0 0.0
    %1356 = vmatpush1.msra.mxu0 0.0
    %1357 = vmatprep.subr.mxu0 0.0
    %1358 = vmatpush1.msra.mxu0 0.0
    %1359 = vmatprep.subr.mxu0 0.0
    %1360 = vmatpush1.msra.mxu0 0.0
    %1361 = vmatprep.subr.mxu0 0.0
    %1362 = vmatpush1.msra.mxu0 0.0
    %1363 = vmatprep.subr.mxu0 0.0
    %1364 = vmatpush1.msra.mxu0 0.0
    %1365 = vmatprep.subr.mxu0 0.0
    %1366 = vmatpush1.msra.mxu0 0.0
    %1367 = vmatprep.subr.mxu0 0.0
    %1368 = vmatpush1.msra.mxu0 0.0
    %1369 = vmatprep.subr.mxu0 0.0
    %1370 = vmatpush1.msra.mxu0 0.0
    %1371 = vmatprep.subr.mxu0 0.0
    %1372 = vmatpush1.msra.mxu0 0.0
    %1373 = vmatprep.subr.mxu0 0.0
    %1374 = vmatpush1.msra.mxu0 0.0
    %1375 = vmatprep.subr.mxu0 0.0
    %1376 = vmatpush1.msra.mxu0 0.0
    %1377 = vmatprep.subr.mxu0 0.0
    %1378 = vmatpush1.msra.mxu0 0.0
    %1379 = vmatprep.subr.mxu0 0.0
    %1380 = vmatpush1.msra.mxu0 0.0
    %1381 = vmatprep.subr.mxu0 0.0
    %1382 = vmatpush1.msra.mxu0 0.0
    %1383 = vmatprep.subr.mxu0 0.0
    %1384 = vmatpush1.msra.mxu0 0.0
    %1385 = vmatprep.subr.mxu0 0.0
    %1386 = vmatpush1.msra.mxu0 0.0
    %1387 = vmatprep.subr.mxu0 0.0
    %1388 = vmatpush1.msra.mxu0 0.0
    %1389 = vmatprep.subr.mxu0 0.0
    %1390 = vmatpush1.msra.mxu0 0.0
    %1391 = vmatprep.subr.mxu0 0.0
    %1392 = vmatpush1.msra.mxu0 0.0
    %1393 = vmatprep.subr.mxu0 0.0
    %1394 = vmatpush1.msra.mxu0 0.0
    %1395 = vmatprep.subr.mxu0 0.0
    %1396 = vmatpush1.msra.mxu0 0.0
    %1397 = vmatprep.mubr.f32.mxu0 0.0
    %1398 = vmatmul.mubr.f32.gmra.mrb[0].mxu0 %v1328
    %v1399 = vpop.f32.mrb[0].mxu0
    %v1400 = vadd.f32 %v1325, %v1399
    %v1401 = vpop.f32.mrb[0].mxu0
    %1402 = vmatprep.mubr.f32.mxu0 0.0
    %1403 = vmatmul.mubr.f32.gmra.mrb[0].mxu0 %v1331
    %v1404 = vpop.f32.mrb[0].mxu0
    %v1405 = vadd.f32 %v1325, %v1404
    %v1406 = vpop.f32.mrb[0].mxu0
    %1407 = vdwg.mxu0
    %v1408 = vtanh.pop %v1400
    %v1409 = vtanh.pop %v1405
    %v1411 = vsel %vm239, %v1408, 0
    %v1414 = vsel %vm239, %v1409, 0
    %1416 = vmatprep.subr.mxu0 0.0
    %1417 = vmatpush1.msra.mxu0 %v730
    %1418 = vmatprep.subr.mxu0 0.0
    %1419 = vmatpush1.msra.mxu0 %v731
    %1420 = vmatprep.subr.mxu0 0.0
    %1421 = vmatpush1.msra.mxu0 %v732
    %1422 = vmatprep.subr.mxu0 0.0
    %1423 = vmatpush1.msra.mxu0 %v733
    %1424 = vmatprep.subr.mxu0 0.0
    %1425 = vmatpush1.msra.mxu0 0.0
    %1426 = vmatprep.subr.mxu0 0.0
    %1427 = vmatpush1.msra.mxu0 0.0
    %1428 = vmatprep.subr.mxu0 0.0
    %1429 = vmatpush1.msra.mxu0 0.0
    %1430 = vmatprep.subr.mxu0 0.0
    %1431 = vmatpush1.msra.mxu0 0.0
    %1432 = vmatprep.subr.mxu0 0.0
    %1433 = vmatpush1.msra.mxu0 0.0
    %1434 = vmatprep.subr.mxu0 0.0
    %1435 = vmatpush1.msra.mxu0 0.0
    %1436 = vmatprep.subr.mxu0 0.0
    %1437 = vmatpush1.msra.mxu0 0.0
    %1438 = vmatprep.subr.mxu0 0.0
    %1439 = vmatpush1.msra.mxu0 0.0
    %1440 = vmatprep.subr.mxu0 0.0
    %1441 = vmatpush1.msra.mxu0 0.0
    %1442 = vmatprep.subr.mxu0 0.0
    %1443 = vmatpush1.msra.mxu0 0.0
    %1444 = vmatprep.subr.mxu0 0.0
    %1445 = vmatpush1.msra.mxu0 0.0
    %1446 = vmatprep.subr.mxu0 0.0
    %1447 = vmatpush1.msra.mxu0 0.0
    %1448 = vmatprep.subr.mxu0 0.0
    %1449 = vmatpush1.msra.mxu0 0.0
    %1450 = vmatprep.subr.mxu0 0.0
    %1451 = vmatpush1.msra.mxu0 0.0
    %1452 = vmatprep.subr.mxu0 0.0
    %1453 = vmatpush1.msra.mxu0 0.0
    %1454 = vmatprep.subr.mxu0 0.0
    %1455 = vmatpush1.msra.mxu0 0.0
    %1456 = vmatprep.subr.mxu0 0.0
    %1457 = vmatpush1.msra.mxu0 0.0
    %1458 = vmatprep.subr.mxu0 0.0
    %1459 = vmatpush1.msra.mxu0 0.0
    %1460 = vmatprep.subr.mxu0 0.0
    %1461 = vmatpush1.msra.mxu0 0.0
    %1462 = vmatprep.subr.mxu0 0.0
    %1463 = vmatpush1.msra.mxu0 0.0
    %1464 = vmatprep.subr.mxu0 0.0
    %1465 = vmatpush1.msra.mxu0 0.0
    %1466 = vmatprep.subr.mxu0 0.0
    %1467 = vmatpush1.msra.mxu0 0.0
    %1468 = vmatprep.subr.mxu0 0.0
    %1469 = vmatpush1.msra.mxu0 0.0
    %1470 = vmatprep.subr.mxu0 0.0
    %1471 = vmatpush1.msra.mxu0 0.0
    %1472 = vmatprep.subr.mxu0 0.0
    %1473 = vmatpush1.msra.mxu0 0.0
    %1474 = vmatprep.subr.mxu0 0.0
    %1475 = vmatpush1.msra.mxu0 0.0
    %1476 = vmatprep.subr.mxu0 0.0
    %1477 = vmatpush1.msra.mxu0 0.0
    %1478 = vmatprep.subr.mxu0 0.0
    %1479 = vmatpush1.msra.mxu0 0.0
    %1480 = vmatprep.mubr.f32.mxu0 0.0
    %1481 = vmatmul.mubr.f32.gmra.mrb[0].mxu0 %v1411
    %v1482 = vpop.f32.mrb[0].mxu0
    %v1483 = vadd.f32 0.0, %v1482
    %v1484 = vpop.f32.mrb[0].mxu0
    %1485 = vmatprep.mubr.f32.mxu0 0.0
    %1486 = vmatmul.mubr.f32.gmra.mrb[0].mxu0 %v1414
    %v1487 = vpop.f32.mrb[0].mxu0
    %v1488 = vadd.f32 0.0, %v1487
    %v1489 = vpop.f32.mrb[0].mxu0
    %1490 = vdwg.mxu0
    %v1491 = vadd.f32 %v1483, %v820
    %v1492 = vadd.f32 %v1488, %v820
    %v1493 = vtanh.pop %v1491
    %v1494 = vtanh.pop %v1492
    %v1495 = vadd.f32 %v1483, %v831
    %v1496 = vadd.f32 %v1488, %v831
    %v1497 = vsub.f32 %v1312, %v1495
    %v1498 = vsub.f32 %v1313, %v1496
    %v1499 = vsub.f32 0.0, %v1493
    %v1500 = vsub.f32 0.0, %v1494
    %v1501 = vmul.f32 %v1499, 1.442695
    %v1502 = vpow.pop %v1501
    %v1503 = vmul.f32 %v1500, 1.442695
    %v1504 = vpow.pop %v1503
    %1507 = vrot.lane.b32.xlu0 %v1502, 8
    %v1508 = vpop.permute.xlu0 %1507
    %1509 = vrot.lane.b32.xlu0 %v1504, 8
    %v1510 = vpop.permute.xlu0 %1509
    %v1513 = vmul.f32 %v1497, %v1508
    %v1514 = vmul.f32 %v1498, %v1510
    %v1515 = vlaneseq
    %v1516 = vshrl.u32 %v1515, 7
    %v1517 = vsub.s32 4, %v1516
    %v1518 = vrot.slane %v607, %v1517
    %v1519 = vmul.f32 %v1320, %v1518
    %v1520 = vmul.f32 %v1321, %v1518
    %v1521 = vadd.f32 %v1519, %v700
    %v1522 = vadd.f32 %v1520, %v700
    %v1523 = vlaneseq
    %v1524 = vshrl.u32 %v1523, 7
    %v1525 = vsub.s32 5, %v1524
    %v1526 = vrot.slane %v607, %v1525
    %1528 = vrot.lane.b32.xlu0 %v1526, 8
    %v1529 = vpop.permute.xlu0 %1528
    %v1531 = vmul.f32 %v1513, %v1529
    %v1532 = vmul.f32 %v1514, %v1529
    %v1533 = vadd.f32 %v1531, %v715
    %v1534 = vadd.f32 %v1532, %v715
    %s1535 = scalar_lea.vmem %s3, 40
    %v1536 = vld [vmem:[%s1535] sm:$0xff]
    %1539 = vrot.lane.b32.xlu0 %v1533, 120
    %v1540 = vpop.permute.xlu0 %1539
    %1541 = vrot.lane.b32.xlu0 %v1534, 120
    %v1542 = vpop.permute.xlu0 %1541
    %1543 = vrot.lane.b32.xlu0 %v1105, 96
    %v1544 = vpop.permute.xlu0 %1543
    %v1546 = vsel %vm119, %v1540, 0
    %v1548 = vsel %vm119, %v1542, 0
    %1550 = vmatprep.subr.mxu0 0.0
    %1551 = vmatpush1.msra.mxu0 %v1536
    %1552 = vmatprep.subr.mxu0 0.0
    %1553 = vmatpush1.msra.mxu0 0.0
    %1554 = vmatprep.subr.mxu0 0.0
    %1555 = vmatpush1.msra.mxu0 0.0
    %1556 = vmatprep.subr.mxu0 0.0
    %1557 = vmatpush1.msra.mxu0 0.0
    %1558 = vmatprep.subr.mxu0 0.0
    %1559 = vmatpush1.msra.mxu0 0.0
    %1560 = vmatprep.subr.mxu0 0.0
    %1561 = vmatpush1.msra.mxu0 0.0
    %1562 = vmatprep.subr.mxu0 0.0
    %1563 = vmatpush1.msra.mxu0 0.0
    %1564 = vmatprep.subr.mxu0 0.0
    %1565 = vmatpush1.msra.mxu0 0.0
    %1566 = vmatprep.subr.mxu0 0.0
    %1567 = vmatpush1.msra.mxu0 0.0
    %1568 = vmatprep.subr.mxu0 0.0
    %1569 = vmatpush1.msra.mxu0 0.0
    %1570 = vmatprep.subr.mxu0 0.0
    %1571 = vmatpush1.msra.mxu0 0.0
    %1572 = vmatprep.subr.mxu0 0.0
    %1573 = vmatpush1.msra.mxu0 0.0
    %1574 = vmatprep.subr.mxu0 0.0
    %1575 = vmatpush1.msra.mxu0 0.0
    %1576 = vmatprep.subr.mxu0 0.0
    %1577 = vmatpush1.msra.mxu0 0.0
    %1578 = vmatprep.subr.mxu0 0.0
    %1579 = vmatpush1.msra.mxu0 0.0
    %1580 = vmatprep.subr.mxu0 0.0
    %1581 = vmatpush1.msra.mxu0 0.0
    %1582 = vmatprep.subr.mxu0 0.0
    %1583 = vmatpush1.msra.mxu0 0.0
    %1584 = vmatprep.subr.mxu0 0.0
    %1585 = vmatpush1.msra.mxu0 0.0
    %1586 = vmatprep.subr.mxu0 0.0
    %1587 = vmatpush1.msra.mxu0 0.0
    %1588 = vmatprep.subr.mxu0 0.0
    %1589 = vmatpush1.msra.mxu0 0.0
    %1590 = vmatprep.subr.mxu0 0.0
    %1591 = vmatpush1.msra.mxu0 0.0
    %1592 = vmatprep.subr.mxu0 0.0
    %1593 = vmatpush1.msra.mxu0 0.0
    %1594 = vmatprep.subr.mxu0 0.0
    %1595 = vmatpush1.msra.mxu0 0.0
    %1596 = vmatprep.subr.mxu0 0.0
    %1597 = vmatpush1.msra.mxu0 0.0
    %1598 = vmatprep.subr.mxu0 0.0
    %1599 = vmatpush1.msra.mxu0 0.0
    %1600 = vmatprep.subr.mxu0 0.0
    %1601 = vmatpush1.msra.mxu0 0.0
    %1602 = vmatprep.subr.mxu0 0.0
    %1603 = vmatpush1.msra.mxu0 0.0
    %1604 = vmatprep.subr.mxu0 0.0
    %1605 = vmatpush1.msra.mxu0 0.0
    %1606 = vmatprep.subr.mxu0 0.0
    %1607 = vmatpush1.msra.mxu0 0.0
    %1608 = vmatprep.subr.mxu0 0.0
    %1609 = vmatpush1.msra.mxu0 0.0
    %1610 = vmatprep.subr.mxu0 0.0
    %1611 = vmatpush1.msra.mxu0 0.0
    %1612 = vmatprep.subr.mxu0 0.0
    %1613 = vmatpush1.msra.mxu0 0.0
    %1614 = vmatprep.mubr.f32.mxu0 0.0
    %1615 = vmatmul.mubr.f32.gmra.mrb[0].mxu0 %v1546
    %v1616 = vpop.f32.mrb[0].mxu0
    %v1617 = vadd.f32 %v1544, %v1616
    %v1618 = vpop.f32.mrb[0].mxu0
    %1619 = vmatprep.mubr.f32.mxu0 0.0
    %1620 = vmatmul.mubr.f32.gmra.mrb[0].mxu0 %v1548
    %v1621 = vpop.f32.mrb[0].mxu0
    %v1622 = vadd.f32 %v1544, %v1621
    %v1623 = vpop.f32.mrb[0].mxu0
    %1624 = vdwg.mxu0
    %v1625 = vtanh.pop %v1617
    %v1626 = vtanh.pop %v1622
    %v1628 = vsel %vm239, %v1625, 0
    %v1631 = vsel %vm239, %v1626, 0
    %1633 = vmatprep.subr.mxu0 0.0
    %1634 = vmatpush1.msra.mxu0 %v485
    %1635 = vmatprep.subr.mxu0 0.0
    %1636 = vmatpush1.msra.mxu0 %v486
    %1637 = vmatprep.subr.mxu0 0.0
    %1638 = vmatpush1.msra.mxu0 %v487
    %1639 = vmatprep.subr.mxu0 0.0
    %1640 = vmatpush1.msra.mxu0 %v488
    %1641 = vmatprep.subr.mxu0 0.0
    %1642 = vmatpush1.msra.mxu0 0.0
    %1643 = vmatprep.subr.mxu0 0.0
    %1644 = vmatpush1.msra.mxu0 0.0
    %1645 = vmatprep.subr.mxu0 0.0
    %1646 = vmatpush1.msra.mxu0 0.0
    %1647 = vmatprep.subr.mxu0 0.0
    %1648 = vmatpush1.msra.mxu0 0.0
    %1649 = vmatprep.subr.mxu0 0.0
    %1650 = vmatpush1.msra.mxu0 0.0
    %1651 = vmatprep.subr.mxu0 0.0
    %1652 = vmatpush1.msra.mxu0 0.0
    %1653 = vmatprep.subr.mxu0 0.0
    %1654 = vmatpush1.msra.mxu0 0.0
    %1655 = vmatprep.subr.mxu0 0.0
    %1656 = vmatpush1.msra.mxu0 0.0
    %1657 = vmatprep.subr.mxu0 0.0
    %1658 = vmatpush1.msra.mxu0 0.0
    %1659 = vmatprep.subr.mxu0 0.0
    %1660 = vmatpush1.msra.mxu0 0.0
    %1661 = vmatprep.subr.mxu0 0.0
    %1662 = vmatpush1.msra.mxu0 0.0
    %1663 = vmatprep.subr.mxu0 0.0
    %1664 = vmatpush1.msra.mxu0 0.0
    %1665 = vmatprep.subr.mxu0 0.0
    %1666 = vmatpush1.msra.mxu0 0.0
    %1667 = vmatprep.subr.mxu0 0.0
    %1668 = vmatpush1.msra.mxu0 0.0
    %1669 = vmatprep.subr.mxu0 0.0
    %1670 = vmatpush1.msra.mxu0 0.0
    %1671 = vmatprep.subr.mxu0 0.0
    %1672 = vmatpush1.msra.mxu0 0.0
    %1673 = vmatprep.subr.mxu0 0.0
    %1674 = vmatpush1.msra.mxu0 0.0
    %1675 = vmatprep.subr.mxu0 0.0
    %1676 = vmatpush1.msra.mxu0 0.0
    %1677 = vmatprep.subr.mxu0 0.0
    %1678 = vmatpush1.msra.mxu0 0.0
    %1679 = vmatprep.subr.mxu0 0.0
    %1680 = vmatpush1.msra.mxu0 0.0
    %1681 = vmatprep.subr.mxu0 0.0
    %1682 = vmatpush1.msra.mxu0 0.0
    %1683 = vmatprep.subr.mxu0 0.0
    %1684 = vmatpush1.msra.mxu0 0.0
    %1685 = vmatprep.subr.mxu0 0.0
    %1686 = vmatpush1.msra.mxu0 0.0
    %1687 = vmatprep.subr.mxu0 0.0
    %1688 = vmatpush1.msra.mxu0 0.0
    %1689 = vmatprep.subr.mxu0 0.0
    %1690 = vmatpush1.msra.mxu0 0.0
    %1691 = vmatprep.subr.mxu0 0.0
    %1692 = vmatpush1.msra.mxu0 0.0
    %1693 = vmatprep.subr.mxu0 0.0
    %1694 = vmatpush1.msra.mxu0 0.0
    %1695 = vmatprep.subr.mxu0 0.0
    %1696 = vmatpush1.msra.mxu0 0.0
    %1697 = vmatprep.mubr.f32.mxu0 0.0
    %1698 = vmatmul.mubr.f32.gmra.mrb[0].mxu0 %v1628
    %v1699 = vpop.f32.mrb[0].mxu0
    %v1700 = vadd.f32 0.0, %v1699
    %v1701 = vpop.f32.mrb[0].mxu0
    %1702 = vmatprep.mubr.f32.mxu0 0.0
    %1703 = vmatmul.mubr.f32.gmra.mrb[0].mxu0 %v1631
    %v1704 = vpop.f32.mrb[0].mxu0
    %v1705 = vadd.f32 0.0, %v1704
    %v1706 = vpop.f32.mrb[0].mxu0
    %1707 = vdwg.mxu0
    %v1708 = vadd.f32 %v1700, %v575
    %v1709 = vadd.f32 %v1705, %v575
    %v1710 = vtanh.pop %v1708
    %v1711 = vtanh.pop %v1709
    %v1712 = vadd.f32 %v1700, %v586
    %v1713 = vadd.f32 %v1705, %v586
    %1716 = vrot.lane.b32.xlu0 %v1712, 120
    %v1717 = vpop.permute.xlu0 %1716
    %1718 = vrot.lane.b32.xlu0 %v1713, 120
    %v1719 = vpop.permute.xlu0 %1718
    %v1722 = vsub.f32 %v1521, %v1717
    %v1723 = vsub.f32 %v1522, %v1719
    %v1724 = vsub.f32 0.0, %v1710
    %v1725 = vsub.f32 0.0, %v1711
    %v1726 = vmul.f32 %v1724, 1.442695
    %v1727 = vpow.pop %v1726
    %v1728 = vmul.f32 %v1725, 1.442695
    %v1729 = vpow.pop %v1728
    %v1730 = vmul.f32 %v1722, %v1727
    %v1731 = vmul.f32 %v1723, %v1729
    %v1732 = vlaneseq
    %v1733 = vshrl.u32 %v1732, 7
    %v1734 = vsub.s32 4, %v1733
    %v1735 = vrot.slane %v356, %v1734
    %1737 = vrot.lane.b32.xlu0 %v1735, 8
    %v1738 = vpop.permute.xlu0 %1737
    %v1740 = vmul.f32 %v1533, %v1738
    %v1741 = vmul.f32 %v1534, %v1738
    %v1742 = vadd.f32 %v1740, %v458
    %v1743 = vadd.f32 %v1741, %v458
    %v1744 = vlaneseq
    %v1745 = vshrl.u32 %v1744, 7
    %v1746 = vsub.s32 5, %v1745
    %v1747 = vrot.slane %v356, %v1746
    %v1748 = vmul.f32 %v1730, %v1747
    %v1749 = vmul.f32 %v1731, %v1747
    %v1750 = vadd.f32 %v1748, %v475
    %v1751 = vadd.f32 %v1749, %v475
    %s1752 = scalar_lea.vmem %s3, 32
    %v1753 = vld [vmem:[%s1752] sm:$0xff]
    %v1755 = vsel %vm119, %v1750, 0
    %v1758 = vsel %vm119, %v1751, 0
    %1760 = vmatprep.subr.mxu0 0.0
    %1761 = vmatpush1.msra.mxu0 %v1753
    %1762 = vmatprep.subr.mxu0 0.0
    %1763 = vmatpush1.msra.mxu0 0.0
    %1764 = vmatprep.subr.mxu0 0.0
    %1765 = vmatpush1.msra.mxu0 0.0
    %1766 = vmatprep.subr.mxu0 0.0
    %1767 = vmatpush1.msra.mxu0 0.0
    %1768 = vmatprep.subr.mxu0 0.0
    %1769 = vmatpush1.msra.mxu0 0.0
    %1770 = vmatprep.subr.mxu0 0.0
    %1771 = vmatpush1.msra.mxu0 0.0
    %1772 = vmatprep.subr.mxu0 0.0
    %1773 = vmatpush1.msra.mxu0 0.0
    %1774 = vmatprep.subr.mxu0 0.0
    %1775 = vmatpush1.msra.mxu0 0.0
    %1776 = vmatprep.subr.mxu0 0.0
    %1777 = vmatpush1.msra.mxu0 0.0
    %1778 = vmatprep.subr.mxu0 0.0
    %1779 = vmatpush1.msra.mxu0 0.0
    %1780 = vmatprep.subr.mxu0 0.0
    %1781 = vmatpush1.msra.mxu0 0.0
    %1782 = vmatprep.subr.mxu0 0.0
    %1783 = vmatpush1.msra.mxu0 0.0
    %1784 = vmatprep.subr.mxu0 0.0
    %1785 = vmatpush1.msra.mxu0 0.0
    %1786 = vmatprep.subr.mxu0 0.0
    %1787 = vmatpush1.msra.mxu0 0.0
    %1788 = vmatprep.subr.mxu0 0.0
    %1789 = vmatpush1.msra.mxu0 0.0
    %1790 = vmatprep.subr.mxu0 0.0
    %1791 = vmatpush1.msra.mxu0 0.0
    %1792 = vmatprep.subr.mxu0 0.0
    %1793 = vmatpush1.msra.mxu0 0.0
    %1794 = vmatprep.subr.mxu0 0.0
    %1795 = vmatpush1.msra.mxu0 0.0
    %1796 = vmatprep.subr.mxu0 0.0
    %1797 = vmatpush1.msra.mxu0 0.0
    %1798 = vmatprep.subr.mxu0 0.0
    %1799 = vmatpush1.msra.mxu0 0.0
    %1800 = vmatprep.subr.mxu0 0.0
    %1801 = vmatpush1.msra.mxu0 0.0
    %1802 = vmatprep.subr.mxu0 0.0
    %1803 = vmatpush1.msra.mxu0 0.0
    %1804 = vmatprep.subr.mxu0 0.0
    %1805 = vmatpush1.msra.mxu0 0.0
    %1806 = vmatprep.subr.mxu0 0.0
    %1807 = vmatpush1.msra.mxu0 0.0
    %1808 = vmatprep.subr.mxu0 0.0
    %1809 = vmatpush1.msra.mxu0 0.0
    %1810 = vmatprep.subr.mxu0 0.0
    %1811 = vmatpush1.msra.mxu0 0.0
    %1812 = vmatprep.subr.mxu0 0.0
    %1813 = vmatpush1.msra.mxu0 0.0
    %1814 = vmatprep.subr.mxu0 0.0
    %1815 = vmatpush1.msra.mxu0 0.0
    %1816 = vmatprep.subr.mxu0 0.0
    %1817 = vmatpush1.msra.mxu0 0.0
    %1818 = vmatprep.subr.mxu0 0.0
    %1819 = vmatpush1.msra.mxu0 0.0
    %1820 = vmatprep.subr.mxu0 0.0
    %1821 = vmatpush1.msra.mxu0 0.0
    %1822 = vmatprep.subr.mxu0 0.0
    %1823 = vmatpush1.msra.mxu0 0.0
    %1824 = vmatprep.mubr.f32.mxu0 0.0
    %1825 = vmatmul.mubr.f32.gmra.mrb[0].mxu0 %v1755
    %v1826 = vpop.f32.mrb[0].mxu0
    %v1827 = vadd.f32 %v1105, %v1826
    %v1828 = vpop.f32.mrb[0].mxu0
    %1829 = vmatprep.mubr.f32.mxu0 0.0
    %1830 = vmatmul.mubr.f32.gmra.mrb[0].mxu0 %v1758
    %v1831 = vpop.f32.mrb[0].mxu0
    %v1832 = vadd.f32 %v1105, %v1831
    %v1833 = vpop.f32.mrb[0].mxu0
    %1834 = vdwg.mxu0
    %v1835 = vtanh.pop %v1827
    %v1836 = vtanh.pop %v1832
    %v1838 = vsel %vm239, %v1835, 0
    %v1841 = vsel %vm239, %v1836, 0
    %1843 = vmatprep.subr.mxu0 0.0
    %1844 = vmatpush1.msra.mxu0 %v233
    %1845 = vmatprep.subr.mxu0 0.0
    %1846 = vmatpush1.msra.mxu0 %v234
    %1847 = vmatprep.subr.mxu0 0.0
    %1848 = vmatpush1.msra.mxu0 %v235
    %1849 = vmatprep.subr.mxu0 0.0
    %1850 = vmatpush1.msra.mxu0 %v236
    %1851 = vmatprep.subr.mxu0 0.0
    %1852 = vmatpush1.msra.mxu0 0.0
    %1853 = vmatprep.subr.mxu0 0.0
    %1854 = vmatpush1.msra.mxu0 0.0
    %1855 = vmatprep.subr.mxu0 0.0
    %1856 = vmatpush1.msra.mxu0 0.0
    %1857 = vmatprep.subr.mxu0 0.0
    %1858 = vmatpush1.msra.mxu0 0.0
    %1859 = vmatprep.subr.mxu0 0.0
    %1860 = vmatpush1.msra.mxu0 0.0
    %1861 = vmatprep.subr.mxu0 0.0
    %1862 = vmatpush1.msra.mxu0 0.0
    %1863 = vmatprep.subr.mxu0 0.0
    %1864 = vmatpush1.msra.mxu0 0.0
    %1865 = vmatprep.subr.mxu0 0.0
    %1866 = vmatpush1.msra.mxu0 0.0
    %1867 = vmatprep.subr.mxu0 0.0
    %1868 = vmatpush1.msra.mxu0 0.0
    %1869 = vmatprep.subr.mxu0 0.0
    %1870 = vmatpush1.msra.mxu0 0.0
    %1871 = vmatprep.subr.mxu0 0.0
    %1872 = vmatpush1.msra.mxu0 0.0
    %1873 = vmatprep.subr.mxu0 0.0
    %1874 = vmatpush1.msra.mxu0 0.0
    %1875 = vmatprep.subr.mxu0 0.0
    %1876 = vmatpush1.msra.mxu0 0.0
    %1877 = vmatprep.subr.mxu0 0.0
    %1878 = vmatpush1.msra.mxu0 0.0
    %1879 = vmatprep.subr.mxu0 0.0
    %1880 = vmatpush1.msra.mxu0 0.0
    %1881 = vmatprep.subr.mxu0 0.0
    %1882 = vmatpush1.msra.mxu0 0.0
    %1883 = vmatprep.subr.mxu0 0.0
    %1884 = vmatpush1.msra.mxu0 0.0
    %1885 = vmatprep.subr.mxu0 0.0
    %1886 = vmatpush1.msra.mxu0 0.0
    %1887 = vmatprep.subr.mxu0 0.0
    %1888 = vmatpush1.msra.mxu0 0.0
    %1889 = vmatprep.subr.mxu0 0.0
    %1890 = vmatpush1.msra.mxu0 0.0
    %1891 = vmatprep.subr.mxu0 0.0
    %1892 = vmatpush1.msra.mxu0 0.0
    %1893 = vmatprep.subr.mxu0 0.0
    %1894 = vmatpush1.msra.mxu0 0.0
    %1895 = vmatprep.subr.mxu0 0.0
    %1896 = vmatpush1.msra.mxu0 0.0
    %1897 = vmatprep.subr.mxu0 0.0
    %1898 = vmatpush1.msra.mxu0 0.0
    %1899 = vmatprep.subr.mxu0 0.0
    %1900 = vmatpush1.msra.mxu0 0.0
    %1901 = vmatprep.subr.mxu0 0.0
    %1902 = vmatpush1.msra.mxu0 0.0
    %1903 = vmatprep.subr.mxu0 0.0
    %1904 = vmatpush1.msra.mxu0 0.0
    %1905 = vmatprep.subr.mxu0 0.0
    %1906 = vmatpush1.msra.mxu0 0.0
    %1907 = vmatprep.mubr.f32.mxu0 0.0
    %1908 = vmatmul.mubr.f32.gmra.mrb[0].mxu0 %v1838
    %v1909 = vpop.f32.mrb[0].mxu0
    %v1910 = vadd.f32 0.0, %v1909
    %v1911 = vpop.f32.mrb[0].mxu0
    %1912 = vmatprep.mubr.f32.mxu0 0.0
    %1913 = vmatmul.mubr.f32.gmra.mrb[0].mxu0 %v1841
    %v1914 = vpop.f32.mrb[0].mxu0
    %v1915 = vadd.f32 0.0, %v1914
    %v1916 = vpop.f32.mrb[0].mxu0
    %1917 = vdwg.mxu0
    %v1918 = vadd.f32 %v1910, %v324
    %v1919 = vadd.f32 %v1915, %v324
    %v1920 = vtanh.pop %v1918
    %v1921 = vtanh.pop %v1919
    %v1922 = vadd.f32 %v1910, %v335
    %v1923 = vadd.f32 %v1915, %v335
    %v1924 = vsub.f32 %v1742, %v1922
    %v1925 = vsub.f32 %v1743, %v1923
    %v1926 = vsub.f32 0.0, %v1920
    %v1927 = vsub.f32 0.0, %v1921
    %v1928 = vmul.f32 %v1926, 1.442695
    %v1929 = vpow.pop %v1928
    %v1930 = vmul.f32 %v1927, 1.442695
    %v1931 = vpow.pop %v1930
    %1934 = vrot.lane.b32.xlu0 %v1929, 8
    %v1935 = vpop.permute.xlu0 %1934
    %1936 = vrot.lane.b32.xlu0 %v1931, 8
    %v1937 = vpop.permute.xlu0 %1936
    %v1940 = vmul.f32 %v1924, %v1935
    %v1941 = vmul.f32 %v1925, %v1937
    %v1942 = vlaneseq
    %v1943 = vshrl.u32 %v1942, 7
    %v1944 = vsub.s32 4, %v1943
    %v1945 = vrot.slane %v117, %v1944
    %v1946 = vmul.f32 %v1750, %v1945
    %v1947 = vmul.f32 %v1751, %v1945
    %v1948 = vadd.f32 %v1946, %v204
    %v1949 = vadd.f32 %v1947, %v204
    %v1950 = vlaneseq
    %v1951 = vshrl.u32 %v1950, 7
    %v1952 = vsub.s32 5, %v1951
    %v1953 = vrot.slane %v117, %v1952
    %1955 = vrot.lane.b32.xlu0 %v1953, 8
    %v1956 = vpop.permute.xlu0 %1955
    %v1958 = vmul.f32 %v1940, %v1956
    %v1959 = vmul.f32 %v1941, %v1956
    %v1960 = vadd.f32 %v1958, %v219
    %v1961 = vadd.f32 %v1959, %v219
    %v1962 = vsel %vm119, %v1948, %v1960
    %v1963 = vsel %vm119, %v1949, %v1961
    %1964 = vst.msk [vmem:[#allocation2] sm:$0xff] %vm35, %v1962
    %1965 = vst.msk [vmem:[#allocation2 + $0x8] sm:$0xff] %vm35, %v1963
    // Predicated region
    $region26: #{scvi_optim_trans_forward.1} parent=1 // pred_check
      _
    $region27: #{scvi_optim_trans_forward.1} parent=1 // pred_check_branch
      %1967 = sbr.rel (0) target = $region29
    $region28: #{scvi_optim_trans_forward.1} parent=1 // pred_region
      %s1969 = ssub.s32 256, 256
      %1970 = vsyncadd [#allocation3], %s1969
      %s1971 = sshll.u32 [#allocation2], 4
      %s1972 = int_to_ptr.vmem [resolvable:$true] %s1971
      %1977 = dma.vmem_to_hbm [thread:$0]  %s1972, 256, %s6, [#allocation3], 128, 128, 8
    $region29: #{scvi_optim_trans_forward.1} parent=1 // pred_fallthru
      _
    // Predicated region
    $region30: #{scvi_optim_trans_forward.1} parent=1 // pred_check
      _
    $region31: #{scvi_optim_trans_forward.1} parent=1 // pred_check_branch
      %1979 = sbr.rel (0) target = $region33
    $region32: #{scvi_optim_trans_forward.1} parent=1 // pred_region
      %1980 = dma.done [#allocation3], 256
    $region33: #{scvi_optim_trans_forward.1} parent=1 // pred_fallthru
      _
    %1981 = vsyncpa [#allocation3], 1

</llo_original>
